<compile_context>
chip_gen: v7x
topology: tpu7x:2x2x1
jax: 0.10.0
libtpu: 0.0.40
codegen_flags: <defaults>
</compile_context>

<pallas_src>
import functools

import jax
import jax.numpy as jnp
from jax import lax
from jax.experimental import pallas as pl
from jax.experimental.pallas import tpu as pltpu


def _round_up(x, m):
    return ((x + m - 1) // m) * m


def _cdiv(a, b):
    return (a + b - 1) // b


def _vicreg_kernel(za_ref, zb_ref, out_ref,
                   sum_a_ref, sum_b_ref, sim_ref,
                   gram_a_ref, gram_b_ref,
                   *, n_rows, n_cols, lambda_, mu, nu):
    i = pl.program_id(0)

    @pl.when(i == 0)
    def _init():
        sum_a_ref[...] = jnp.zeros_like(sum_a_ref)
        sum_b_ref[...] = jnp.zeros_like(sum_b_ref)
        sim_ref[...] = jnp.zeros_like(sim_ref)
        gram_a_ref[...] = jnp.zeros_like(gram_a_ref)
        gram_b_ref[...] = jnp.zeros_like(gram_b_ref)

    za = za_ref[...]                      # (tN, D) native dtype (f32 or bf16)
    zb = zb_ref[...]
    za_f = za.astype(jnp.float32)         # single cast site (no-op for f32)
    zb_f = zb.astype(jnp.float32)

    # --- invariance (MSE) partial: per-column vector accumulator -----------
    diff = za_f - zb_f
    sim_ref[...] += jnp.sum(diff * diff, axis=0, keepdims=True)

    # --- per-column first moments (streaming mean) --------------------------
    sum_a_ref[...] += jnp.sum(za_f, axis=0, keepdims=True)
    sum_b_ref[...] += jnp.sum(zb_f, axis=0, keepdims=True)

    # --- raw Gram accumulation on the MXU (contract over batch rows) -------
    # Gram diag doubles as the per-column sum of squares (no separate sumsq).
    dn = (((0,), (0,)), ((), ()))
    gram_a_ref[...] += lax.dot_general(za, za, dn,
                                       preferred_element_type=jnp.float32)
    gram_b_ref[...] += lax.dot_general(zb, zb, dn,
                                       preferred_element_type=jnp.float32)

    @pl.when(i == pl.num_programs(0) - 1)
    def _finalize():
        n = jnp.float32(n_rows)
        d = jnp.float32(n_cols)
        inv_nm1 = 1.0 / (n - 1.0)

        mean_a = sum_a_ref[...] / n        # (1, D)
        mean_b = sum_b_ref[...] / n

        # per-column sum(z^2) == diag of raw Gram (one-time D x D pass).
        rows = lax.broadcasted_iota(jnp.int32, gram_a_ref.shape, 0)
        cols = lax.broadcasted_iota(jnp.int32, gram_a_ref.shape, 1)
        eye = rows == cols
        sq_a = jnp.sum(jnp.where(eye, gram_a_ref[...], 0.0),
                       axis=0, keepdims=True)
        sq_b = jnp.sum(jnp.where(eye, gram_b_ref[...], 0.0),
                       axis=0, keepdims=True)

        # diag of the centered Gram == (N - 1) * unbiased variance.
        diag_a = sq_a - n * mean_a * mean_a
        diag_b = sq_b - n * mean_b * mean_b
        std_a = jnp.sqrt(diag_a * inv_nm1 + 1e-4)
        std_b = jnp.sqrt(diag_b * inv_nm1 + 1e-4)
        std_loss = (jnp.sum(jnp.maximum(1.0 - std_a, 0.0))
                    + jnp.sum(jnp.maximum(1.0 - std_b, 0.0))) / d

        sim_loss = jnp.sum(sim_ref[...]) / (n * d)

        # ||G - n m m^T||_F^2 = ||G||_F^2 - 2 n (m^T G m) + (n * sum(m^2))^2
        # -> off-diag^2 sum of the *unscaled* centered Gram, no D x D temps.
        def _offdiag_sq(gram_ref, mean, diag):
            g = gram_ref[...]
            frob_g = jnp.sum(g * g)
            u = lax.dot_general(mean, g, (((1,), (0,)), ((), ())),
                                preferred_element_type=jnp.float32)   # (1, D)
            m_g_m = jnp.sum(u * mean)
            n_s_m2 = n * jnp.sum(mean * mean)
            frob_c = frob_g - 2.0 * n * m_g_m + n_s_m2 * n_s_m2
            return frob_c - jnp.sum(diag * diag)

        off_a = _offdiag_sq(gram_a_ref, mean_a, diag_a)
        off_b = _offdiag_sq(gram_b_ref, mean_b, diag_b)
        conv_loss = (off_a + off_b) * (inv_nm1 * inv_nm1) / (d * d)

        out_ref[0, 0] = lambda_ * sim_loss + mu * std_loss + nu * conv_loss


def _physical_vmem_bytes():
    try:
        return int(pltpu.get_tpu_info().vmem_capacity_bytes)
    except Exception:
        return 128 << 20      # v5e/v6e default; conservative fallback


def _stream_spec(tn, d, buffer_count):
    idx = lambda i: (i, 0)
    if buffer_count is not None and buffer_count > 2:
        try:
            return pl.BlockSpec((tn, d), idx,
                                pipeline_mode=pl.Buffered(buffer_count))
        except TypeError:   # older BlockSpec without pipeline_mode
            pass
    return pl.BlockSpec((tn, d), idx)


def vicreg_loss(z_a, z_b, lambda_=1.0, mu=1.0, nu=1.0):
    """VICReg loss. z_a, z_b: (N, D) arrays. Returns scalar float32."""
    assert z_a.shape == z_b.shape and z_a.ndim == 2
    n, d = z_a.shape

    itemsize = jnp.dtype(z_a.dtype).itemsize
    sublane = {4: 8, 2: 16, 1: 32}.get(itemsize, 8)

    # --- generation-gated VMEM cap (leave headroom below physical) ---------
    cap = int(_physical_vmem_bytes() * 0.8)   # ~51 MiB v7x, ~102 MiB v5e/v6e

    # --- tile-size selection ------------------------------------------------
    gram_bytes = 2 * d * d * 4
    num_buf = 3 if d <= 512 else 2
    stream_budget = max(8 << 20, (cap - gram_bytes) // 3)
    target_tn = stream_budget // (2 * num_buf * d * itemsize)
    target_tn = max(sublane, min(2048, (target_tn // sublane) * sublane))

    # Balanced tiles; pad only by up to ~sublane rows per step (zero rows are
    # exact: they contribute nothing to any accumulator; true N is used in
    # the scalar math).
    steps = _cdiv(n, target_tn)
    tn = _round_up(_cdiv(n, steps), sublane)
    n_pad = steps * tn
    if n_pad != n:
        z_a = jnp.pad(z_a, ((0, n_pad - n), (0, 0)))
        z_b = jnp.pad(z_b, ((0, n_pad - n), (0, 0)))
    grid = (steps,)

    buffer_count = 3 if (steps >= 3 and d <= 512) else None

    vmem_needed = (2 * num_buf * tn * d * itemsize   # streamed z_a / z_b tiles
                   + gram_bytes                       # Gram accumulators
                   + 3 * d * 4)                       # sum_a/sum_b/sim rows
    vmem_limit = int(min(cap, max(32 << 20, int(1.5 * vmem_needed))))

    kernel = functools.partial(_vicreg_kernel, n_rows=n, n_cols=d,
                               lambda_=float(lambda_), mu=float(mu),
                               nu=float(nu))
    out = pl.pallas_call(
        kernel,
        out_shape=jax.ShapeDtypeStruct((1, 1), jnp.float32),
        grid=grid,
        in_specs=[
            _stream_spec(tn, d, buffer_count),
            _stream_spec(tn, d, buffer_count),
        ],
        out_specs=pl.BlockSpec((1, 1), lambda i: (0, 0),
                               memory_space=pltpu.SMEM),
        scratch_shapes=[
            pltpu.VMEM((1, d), jnp.float32),   # sum_a
            pltpu.VMEM((1, d), jnp.float32),   # sum_b
            pltpu.VMEM((1, d), jnp.float32),   # sim (sum of (za-zb)^2 per col)
            pltpu.VMEM((d, d), jnp.float32),   # Gram accumulator a
            pltpu.VMEM((d, d), jnp.float32),   # Gram accumulator b
        ],
        compiler_params=pltpu.CompilerParams(
            dimension_semantics=("arbitrary",),   # batch axis is a reduction
            vmem_limit_bytes=vmem_limit,
        ),
    )(z_a, z_b)
    return out[0, 0]


def _vicreg_ref(z_a, z_b, lambda_=1.0, mu=1.0, nu=1.0):
    # Pure-JAX reference mirroring the PyTorch forward.
    N = z_a.shape[0]
    sim_loss = jnp.mean((z_a - z_b) ** 2)
    std_a = jnp.sqrt(jnp.var(z_a, axis=0, ddof=1) + 1e-4)
    std_b = jnp.sqrt(jnp.var(z_b, axis=0, ddof=1) + 1e-4)
    std_loss = jnp.mean(jax.nn.relu(1 - std_a)) + jnp.mean(jax.nn.relu(1 - std_b))
    zac = z_a - jnp.mean(z_a, axis=0)
    zbc = z_b - jnp.mean(z_b, axis=0)
    cov_a = zac.T @ zac / (N - 1)
    cov_b = zbc.T @ zbc / (N - 1)
    off_a = cov_a - jnp.diag(jnp.diag(cov_a))
    off_b = cov_b - jnp.diag(jnp.diag(cov_b))
    conv_loss = jnp.mean(off_a ** 2) + jnp.mean(off_b ** 2)
    return lambda_ * sim_loss + mu * std_loss + nu * conv_loss


if __name__ == "__main__":
    key = jax.random.PRNGKey(0)
    ka, kb, kc, kd = jax.random.split(key, 4)

    # Small shape matching the module docstring (batch=32, embedding=128).
    N, D = 32, 128
    z_a = jax.random.normal(ka, (N, D), dtype=jnp.float32)
    z_b = jax.random.normal(kb, (N, D), dtype=jnp.float32)
    loss = jax.block_until_ready(vicreg_loss(z_a, z_b))
    ref = jax.block_until_ready(_vicreg_ref(z_a, z_b))
    assert jnp.allclose(loss, ref, rtol=1e-3, atol=1e-3), (loss, ref)

    # Multi-step streaming path: ragged N, 3 grid steps, triple-buffered inputs.
    N2, D2 = 5000, 128
    z_a2 = jax.random.normal(kc, (N2, D2), dtype=jnp.float32)
    z_b2 = z_a2 + 0.3 * jax.random.normal(kd, (N2, D2), dtype=jnp.float32)
    loss2 = jax.block_until_ready(vicreg_loss(z_a2, z_b2))
    ref2 = jax.block_until_ready(_vicreg_ref(z_a2, z_b2))
    assert jnp.allclose(loss2, ref2, rtol=2e-3, atol=2e-3), (loss2, ref2)

    print("KERNEL_OK")
</pallas_src>

<mosaic_0001>
module attributes {stable_mosaic.version = 11 : i64} {
  func.func @_vicreg_kernel(%arg0: i32, %arg1: memref<32x128xf32, #tpu.memory_space<vmem>>, %arg2: memref<32x128xf32, #tpu.memory_space<vmem>>, %arg3: memref<1x1xf32, #tpu.memory_space<smem>>, %arg4: memref<1x128xf32, #tpu.memory_space<vmem>>, %arg5: memref<1x128xf32, #tpu.memory_space<vmem>>, %arg6: memref<1x128xf32, #tpu.memory_space<vmem>>, %arg7: memref<128x128xf32, #tpu.memory_space<vmem>>, %arg8: memref<128x128xf32, #tpu.memory_space<vmem>>) attributes {dimension_semantics = [#tpu.dimension_semantics<arbitrary>], iteration_bounds = array<i64: 1>, scalar_prefetch = 0 : i64, scratch_operands = 5 : i64, tpu.core_type = #tpu.core_type<tc>, window_params = [{transform_indices = @transform_0, window_bounds = array<i64: 32, 128>}, {transform_indices = @transform_1, window_bounds = array<i64: 32, 128>}, {transform_indices = @transform_2, window_bounds = array<i64: 1, 1>}]} {
    %c0_i32 = arith.constant 0 : i32
    %0 = arith.cmpi eq, %arg0, %c0_i32 : i32
    %1 = arith.extui %0 : i1 to i32
    %c0_i32_0 = arith.constant 0 : i32
    %2 = arith.cmpi ne, %1, %c0_i32_0 : i32
    scf.if %2 {
      %cst_30 = arith.constant 0.000000e+00 : f32
      %33 = vector.broadcast %cst_30 : f32 to vector<1x128xf32>
      %c0_31 = arith.constant 0 : index
      %c0_32 = arith.constant 0 : index
      %34 = vector.load %arg4[%c0_31, %c0_32] : memref<1x128xf32, #tpu.memory_space<vmem>>, vector<1x128xf32>
      tpu.vector_store %arg4[%c0_31, %c0_32], %33 {strides = array<i32>} : memref<1x128xf32, #tpu.memory_space<vmem>>, vector<1x128xf32>,
      %cst_33 = arith.constant 0.000000e+00 : f32
      %35 = vector.broadcast %cst_33 : f32 to vector<1x128xf32>
      %c0_34 = arith.constant 0 : index
      %c0_35 = arith.constant 0 : index
      %36 = vector.load %arg5[%c0_34, %c0_35] : memref<1x128xf32, #tpu.memory_space<vmem>>, vector<1x128xf32>
      tpu.vector_store %arg5[%c0_34, %c0_35], %35 {strides = array<i32>} : memref<1x128xf32, #tpu.memory_space<vmem>>, vector<1x128xf32>,
      %cst_36 = arith.constant 0.000000e+00 : f32
      %37 = vector.broadcast %cst_36 : f32 to vector<1x128xf32>
      %c0_37 = arith.constant 0 : index
      %c0_38 = arith.constant 0 : index
      %38 = vector.load %arg6[%c0_37, %c0_38] : memref<1x128xf32, #tpu.memory_space<vmem>>, vector<1x128xf32>
      tpu.vector_store %arg6[%c0_37, %c0_38], %37 {strides = array<i32>} : memref<1x128xf32, #tpu.memory_space<vmem>>, vector<1x128xf32>,
      %cst_39 = arith.constant 0.000000e+00 : f32
      %39 = vector.broadcast %cst_39 : f32 to vector<128x128xf32>
      %c0_40 = arith.constant 0 : index
      %c0_41 = arith.constant 0 : index
      %40 = vector.load %arg7[%c0_40, %c0_41] : memref<128x128xf32, #tpu.memory_space<vmem>>, vector<128x128xf32>
      tpu.vector_store %arg7[%c0_40, %c0_41], %39 {strides = array<i32>} : memref<128x128xf32, #tpu.memory_space<vmem>>, vector<128x128xf32>,
      %cst_42 = arith.constant 0.000000e+00 : f32
      %41 = vector.broadcast %cst_42 : f32 to vector<128x128xf32>
      %c0_43 = arith.constant 0 : index
      %c0_44 = arith.constant 0 : index
      %42 = vector.load %arg8[%c0_43, %c0_44] : memref<128x128xf32, #tpu.memory_space<vmem>>, vector<128x128xf32>
      tpu.vector_store %arg8[%c0_43, %c0_44], %41 {strides = array<i32>} : memref<128x128xf32, #tpu.memory_space<vmem>>, vector<128x128xf32>,
    } else {
    }
    %c0 = arith.constant 0 : index
    %c0_1 = arith.constant 0 : index
    %3 = vector.load %arg1[%c0, %c0_1] : memref<32x128xf32, #tpu.memory_space<vmem>>, vector<32x128xf32>
    %c0_2 = arith.constant 0 : index
    %c0_3 = arith.constant 0 : index
    %4 = vector.load %arg2[%c0_2, %c0_3] : memref<32x128xf32, #tpu.memory_space<vmem>>, vector<32x128xf32>
    %5 = arith.subf %3, %4 : vector<32x128xf32>
    %c0_4 = arith.constant 0 : index
    %c0_5 = arith.constant 0 : index
    %6 = vector.load %arg6[%c0_4, %c0_5] : memref<1x128xf32, #tpu.memory_space<vmem>>, vector<1x128xf32>
    %7 = arith.mulf %5, %5 : vector<32x128xf32>
    %cst = arith.constant dense<0.000000e+00> : vector<128xf32>
    %8 = vector.multi_reduction <add>, %7, %cst [0] : vector<32x128xf32> to vector<128xf32>
    %9 = vector.shape_cast %8 : vector<128xf32> to vector<1x128xf32>
    %10 = arith.addf %6, %9 : vector<1x128xf32>
    %c0_6 = arith.constant 0 : index
    %c0_7 = arith.constant 0 : index
    %11 = vector.load %arg6[%c0_6, %c0_7] : memref<1x128xf32, #tpu.memory_space<vmem>>, vector<1x128xf32>
    tpu.vector_store %arg6[%c0_6, %c0_7], %10 {strides = array<i32>} : memref<1x128xf32, #tpu.memory_space<vmem>>, vector<1x128xf32>,
    %c0_8 = arith.constant 0 : index
    %c0_9 = arith.constant 0 : index
    %12 = vector.load %arg4[%c0_8, %c0_9] : memref<1x128xf32, #tpu.memory_space<vmem>>, vector<1x128xf32>
    %cst_10 = arith.constant dense<0.000000e+00> : vector<128xf32>
    %13 = vector.multi_reduction <add>, %3, %cst_10 [0] : vector<32x128xf32> to vector<128xf32>
    %14 = vector.shape_cast %13 : vector<128xf32> to vector<1x128xf32>
    %15 = arith.addf %12, %14 : vector<1x128xf32>
    %c0_11 = arith.constant 0 : index
    %c0_12 = arith.constant 0 : index
    %16 = vector.load %arg4[%c0_11, %c0_12] : memref<1x128xf32, #tpu.memory_space<vmem>>, vector<1x128xf32>
    tpu.vector_store %arg4[%c0_11, %c0_12], %15 {strides = array<i32>} : memref<1x128xf32, #tpu.memory_space<vmem>>, vector<1x128xf32>,
    %c0_13 = arith.constant 0 : index
    %c0_14 = arith.constant 0 : index
    %17 = vector.load %arg5[%c0_13, %c0_14] : memref<1x128xf32, #tpu.memory_space<vmem>>, vector<1x128xf32>
    %cst_15 = arith.constant dense<0.000000e+00> : vector<128xf32>
    %18 = vector.multi_reduction <add>, %4, %cst_15 [0] : vector<32x128xf32> to vector<128xf32>
    %19 = vector.shape_cast %18 : vector<128xf32> to vector<1x128xf32>
    %20 = arith.addf %17, %19 : vector<1x128xf32>
    %c0_16 = arith.constant 0 : index
    %c0_17 = arith.constant 0 : index
    %21 = vector.load %arg5[%c0_16, %c0_17] : memref<1x128xf32, #tpu.memory_space<vmem>>, vector<1x128xf32>
    tpu.vector_store %arg5[%c0_16, %c0_17], %20 {strides = array<i32>} : memref<1x128xf32, #tpu.memory_space<vmem>>, vector<1x128xf32>,
    %c0_18 = arith.constant 0 : index
    %c0_19 = arith.constant 0 : index
    %22 = vector.load %arg7[%c0_18, %c0_19] : memref<128x128xf32, #tpu.memory_space<vmem>>, vector<128x128xf32>
    %cst_20 = arith.constant dense<0.000000e+00> : vector<128x128xf32>
    %23 = tpu.matmul %3, %3, %cst_20 {dimension_numbers = #tpu.dot_dimension_numbers<[0], [0], [1], [1], [0, 1, 1, 1], [], []>} : vector<32x128xf32>, vector<32x128xf32>, vector<128x128xf32> -> vector<128x128xf32>
    %24 = arith.addf %22, %23 : vector<128x128xf32>
    %c0_21 = arith.constant 0 : index
    %c0_22 = arith.constant 0 : index
    %25 = vector.load %arg7[%c0_21, %c0_22] : memref<128x128xf32, #tpu.memory_space<vmem>>, vector<128x128xf32>
    tpu.vector_store %arg7[%c0_21, %c0_22], %24 {strides = array<i32>} : memref<128x128xf32, #tpu.memory_space<vmem>>, vector<128x128xf32>,
    %c0_23 = arith.constant 0 : index
    %c0_24 = arith.constant 0 : index
    %26 = vector.load %arg8[%c0_23, %c0_24] : memref<128x128xf32, #tpu.memory_space<vmem>>, vector<128x128xf32>
    %cst_25 = arith.constant dense<0.000000e+00> : vector<128x128xf32>
    %27 = tpu.matmul %4, %4, %cst_25 {dimension_numbers = #tpu.dot_dimension_numbers<[0], [0], [1], [1], [0, 1, 1, 1], [], []>} : vector<32x128xf32>, vector<32x128xf32>, vector<128x128xf32> -> vector<128x128xf32>
    %28 = arith.addf %26, %27 : vector<128x128xf32>
    %c0_26 = arith.constant 0 : index
    %c0_27 = arith.constant 0 : index
    %29 = vector.load %arg8[%c0_26, %c0_27] : memref<128x128xf32, #tpu.memory_space<vmem>>, vector<128x128xf32>
    tpu.vector_store %arg8[%c0_26, %c0_27], %28 {strides = array<i32>} : memref<128x128xf32, #tpu.memory_space<vmem>>, vector<128x128xf32>,
    %c0_i32_28 = arith.constant 0 : i32
    %30 = arith.cmpi eq, %arg0, %c0_i32_28 : i32
    %31 = arith.extui %30 : i1 to i32
    %c0_i32_29 = arith.constant 0 : i32
    %32 = arith.cmpi ne, %31, %c0_i32_29 : i32
    scf.if %32 {
      %cst_30 = arith.constant 3.200000e+01 : f32
      %cst_31 = arith.constant 1.000000e+00 : f32
      %33 = arith.subf %cst_30, %cst_31 : f32
      %cst_32 = arith.constant 1.000000e+00 : f32
      %34 = arith.divf %cst_32, %33 : f32
      %c0_33 = arith.constant 0 : index
      %c0_34 = arith.constant 0 : index
      %35 = vector.load %arg4[%c0_33, %c0_34] : memref<1x128xf32, #tpu.memory_space<vmem>>, vector<1x128xf32>
      %cst_35 = arith.constant 3.200000e+01 : f32
      %36 = vector.broadcast %cst_35 : f32 to vector<1x128xf32>
      %37 = arith.divf %35, %36 : vector<1x128xf32>
      %c0_36 = arith.constant 0 : index
      %c0_37 = arith.constant 0 : index
      %38 = vector.load %arg5[%c0_36, %c0_37] : memref<1x128xf32, #tpu.memory_space<vmem>>, vector<1x128xf32>
      %cst_38 = arith.constant 3.200000e+01 : f32
      %39 = vector.broadcast %cst_38 : f32 to vector<1x128xf32>
      %40 = arith.divf %38, %39 : vector<1x128xf32>
      %41 = tpu.iota {dimensions = array<i32: 0>} : vector<128x128xi32>
      %42 = tpu.iota {dimensions = array<i32: 1>} : vector<128x128xi32>
      %43 = arith.cmpi eq, %41, %42 : vector<128x128xi32>
      %c0_39 = arith.constant 0 : index
      %c0_40 = arith.constant 0 : index
      %44 = vector.load %arg7[%c0_39, %c0_40] : memref<128x128xf32, #tpu.memory_space<vmem>>, vector<128x128xf32>
      %cst_41 = arith.constant 0.000000e+00 : f32
      %45 = vector.broadcast %cst_41 : f32 to vector<128x128xf32>
      %46 = arith.select %43, %44, %45 : vector<128x128xi1>, vector<128x128xf32>
      %cst_42 = arith.constant dense<0.000000e+00> : vector<128xf32>
      %47 = vector.multi_reduction <add>, %46, %cst_42 [0] : vector<128x128xf32> to vector<128xf32>
      %48 = vector.shape_cast %47 : vector<128xf32> to vector<1x128xf32>
      %c0_43 = arith.constant 0 : index
      %c0_44 = arith.constant 0 : index
      %49 = vector.load %arg8[%c0_43, %c0_44] : memref<128x128xf32, #tpu.memory_space<vmem>>, vector<128x128xf32>
      %cst_45 = arith.constant 0.000000e+00 : f32
      %50 = vector.broadcast %cst_45 : f32 to vector<128x128xf32>
      %51 = arith.select %43, %49, %50 : vector<128x128xi1>, vector<128x128xf32>
      %cst_46 = arith.constant dense<0.000000e+00> : vector<128xf32>
      %52 = vector.multi_reduction <add>, %51, %cst_46 [0] : vector<128x128xf32> to vector<128xf32>
      %53 = vector.shape_cast %52 : vector<128xf32> to vector<1x128xf32>
      %cst_47 = arith.constant 3.200000e+01 : f32
      %54 = vector.broadcast %cst_47 : f32 to vector<1x128xf32>
      %55 = arith.mulf %54, %37 : vector<1x128xf32>
      %56 = arith.mulf %55, %37 : vector<1x128xf32>
      %57 = arith.subf %48, %56 : vector<1x128xf32>
      %cst_48 = arith.constant 3.200000e+01 : f32
      %58 = vector.broadcast %cst_48 : f32 to vector<1x128xf32>
      %59 = arith.mulf %58, %40 : vector<1x128xf32>
      %60 = arith.mulf %59, %40 : vector<1x128xf32>
      %61 = arith.subf %53, %60 : vector<1x128xf32>
      %62 = vector.broadcast %34 : f32 to vector<1x128xf32>
      %63 = arith.mulf %57, %62 : vector<1x128xf32>
      %cst_49 = arith.constant 9.99999974E-5 : f32
      %64 = vector.broadcast %cst_49 : f32 to vector<1x128xf32>
      %65 = arith.addf %63, %64 : vector<1x128xf32>
      %66 = math.sqrt %65 : vector<1x128xf32>
      %67 = vector.broadcast %34 : f32 to vector<1x128xf32>
      %68 = arith.mulf %61, %67 : vector<1x128xf32>
      %cst_50 = arith.constant 9.99999974E-5 : f32
      %69 = vector.broadcast %cst_50 : f32 to vector<1x128xf32>
      %70 = arith.addf %68, %69 : vector<1x128xf32>
      %71 = math.sqrt %70 : vector<1x128xf32>
      %cst_51 = arith.constant 1.000000e+00 : f32
      %72 = vector.broadcast %cst_51 : f32 to vector<1x128xf32>
      %73 = arith.subf %72, %66 : vector<1x128xf32>
      %cst_52 = arith.constant 0.000000e+00 : f32
      %74 = vector.broadcast %cst_52 : f32 to vector<1x128xf32>
      %75 = arith.maximumf %73, %74 : vector<1x128xf32>
      %76 = vector.shape_cast %75 : vector<1x128xf32> to vector<1x1x128xf32>
      %cst_53 = arith.constant dense<0.000000e+00> : vector<1xf32>
      %77 = vector.multi_reduction <add>, %76, %cst_53 [1, 2] : vector<1x1x128xf32> to vector<1xf32>
      %78 = vector.shape_cast %77 : vector<1xf32> to vector<1x1x1xf32>
      %79 = vector.extract %78[0, 0, 0] : f32 from vector<1x1x1xf32>
      %cst_54 = arith.constant 1.000000e+00 : f32
      %80 = vector.broadcast %cst_54 : f32 to vector<1x128xf32>
      %81 = arith.subf %80, %71 : vector<1x128xf32>
      %cst_55 = arith.constant 0.000000e+00 : f32
      %82 = vector.broadcast %cst_55 : f32 to vector<1x128xf32>
      %83 = arith.maximumf %81, %82 : vector<1x128xf32>
      %84 = vector.shape_cast %83 : vector<1x128xf32> to vector<1x1x128xf32>
      %cst_56 = arith.constant dense<0.000000e+00> : vector<1xf32>
      %85 = vector.multi_reduction <add>, %84, %cst_56 [1, 2] : vector<1x1x128xf32> to vector<1xf32>
      %86 = vector.shape_cast %85 : vector<1xf32> to vector<1x1x1xf32>
      %87 = vector.extract %86[0, 0, 0] : f32 from vector<1x1x1xf32>
      %88 = arith.addf %79, %87 : f32
      %cst_57 = arith.constant 1.280000e+02 : f32
      %89 = arith.divf %88, %cst_57 : f32
      %c0_58 = arith.constant 0 : index
      %c0_59 = arith.constant 0 : index
      %90 = vector.load %arg6[%c0_58, %c0_59] : memref<1x128xf32, #tpu.memory_space<vmem>>, vector<1x128xf32>
      %91 = vector.shape_cast %90 : vector<1x128xf32> to vector<1x1x128xf32>
      %cst_60 = arith.constant dense<0.000000e+00> : vector<1xf32>
      %92 = vector.multi_reduction <add>, %91, %cst_60 [1, 2] : vector<1x1x128xf32> to vector<1xf32>
      %93 = vector.shape_cast %92 : vector<1xf32> to vector<1x1x1xf32>
      %94 = vector.extract %93[0, 0, 0] : f32 from vector<1x1x1xf32>
      %cst_61 = arith.constant 3.200000e+01 : f32
      %cst_62 = arith.constant 1.280000e+02 : f32
      %95 = arith.mulf %cst_61, %cst_62 : f32
      %96 = arith.divf %94, %95 : f32
      %c0_63 = arith.constant 0 : index
      %c0_64 = arith.constant 0 : index
      %97 = vector.load %arg7[%c0_63, %c0_64] : memref<128x128xf32, #tpu.memory_space<vmem>>, vector<128x128xf32>
      %98 = arith.mulf %97, %97 : vector<128x128xf32>
      %99 = vector.shape_cast %98 : vector<128x128xf32> to vector<1x128x128xf32>
      %cst_65 = arith.constant dense<0.000000e+00> : vector<1xf32>
      %100 = vector.multi_reduction <add>, %99, %cst_65 [1, 2] : vector<1x128x128xf32> to vector<1xf32>
      %101 = vector.shape_cast %100 : vector<1xf32> to vector<1x1x1xf32>
      %102 = vector.extract %101[0, 0, 0] : f32 from vector<1x1x1xf32>
      %cst_66 = arith.constant dense<0.000000e+00> : vector<1x128xf32>
      %103 = tpu.matmul %37, %97, %cst_66 {dimension_numbers = #tpu.dot_dimension_numbers<[1], [0], [0], [1], [0, 0, 1, 1], [], []>} : vector<1x128xf32>, vector<128x128xf32>, vector<1x128xf32> -> vector<1x128xf32>
      %104 = arith.mulf %103, %37 : vector<1x128xf32>
      %105 = vector.shape_cast %104 : vector<1x128xf32> to vector<1x1x128xf32>
      %cst_67 = arith.constant dense<0.000000e+00> : vector<1xf32>
      %106 = vector.multi_reduction <add>, %105, %cst_67 [1, 2] : vector<1x1x128xf32> to vector<1xf32>
      %107 = vector.shape_cast %106 : vector<1xf32> to vector<1x1x1xf32>
      %108 = vector.extract %107[0, 0, 0] : f32 from vector<1x1x1xf32>
      %109 = arith.mulf %37, %37 : vector<1x128xf32>
      %110 = vector.shape_cast %109 : vector<1x128xf32> to vector<1x1x128xf32>
      %cst_68 = arith.constant dense<0.000000e+00> : vector<1xf32>
      %111 = vector.multi_reduction <add>, %110, %cst_68 [1, 2] : vector<1x1x128xf32> to vector<1xf32>
      %112 = vector.shape_cast %111 : vector<1xf32> to vector<1x1x1xf32>
      %113 = vector.extract %112[0, 0, 0] : f32 from vector<1x1x1xf32>
      %cst_69 = arith.constant 3.200000e+01 : f32
      %114 = arith.mulf %cst_69, %113 : f32
      %cst_70 = arith.constant 2.000000e+00 : f32
      %cst_71 = arith.constant 3.200000e+01 : f32
      %115 = arith.mulf %cst_70, %cst_71 : f32
      %116 = arith.mulf %115, %108 : f32
      %117 = arith.subf %102, %116 : f32
      %118 = arith.mulf %114, %114 : f32
      %119 = arith.addf %117, %118 : f32
      %120 = arith.mulf %57, %57 : vector<1x128xf32>
      %121 = vector.shape_cast %120 : vector<1x128xf32> to vector<1x1x128xf32>
      %cst_72 = arith.constant dense<0.000000e+00> : vector<1xf32>
      %122 = vector.multi_reduction <add>, %121, %cst_72 [1, 2] : vector<1x1x128xf32> to vector<1xf32>
      %123 = vector.shape_cast %122 : vector<1xf32> to vector<1x1x1xf32>
      %124 = vector.extract %123[0, 0, 0] : f32 from vector<1x1x1xf32>
      %125 = arith.subf %119, %124 : f32
      %c0_73 = arith.constant 0 : index
      %c0_74 = arith.constant 0 : index
      %126 = vector.load %arg8[%c0_73, %c0_74] : memref<128x128xf32, #tpu.memory_space<vmem>>, vector<128x128xf32>
      %127 = arith.mulf %126, %126 : vector<128x128xf32>
      %128 = vector.shape_cast %127 : vector<128x128xf32> to vector<1x128x128xf32>
      %cst_75 = arith.constant dense<0.000000e+00> : vector<1xf32>
      %129 = vector.multi_reduction <add>, %128, %cst_75 [1, 2] : vector<1x128x128xf32> to vector<1xf32>
      %130 = vector.shape_cast %129 : vector<1xf32> to vector<1x1x1xf32>
      %131 = vector.extract %130[0, 0, 0] : f32 from vector<1x1x1xf32>
      %cst_76 = arith.constant dense<0.000000e+00> : vector<1x128xf32>
      %132 = tpu.matmul %40, %126, %cst_76 {dimension_numbers = #tpu.dot_dimension_numbers<[1], [0], [0], [1], [0, 0, 1, 1], [], []>} : vector<1x128xf32>, vector<128x128xf32>, vector<1x128xf32> -> vector<1x128xf32>
      %133 = arith.mulf %132, %40 : vector<1x128xf32>
      %134 = vector.shape_cast %133 : vector<1x128xf32> to vector<1x1x128xf32>
      %cst_77 = arith.constant dense<0.000000e+00> : vector<1xf32>
      %135 = vector.multi_reduction <add>, %134, %cst_77 [1, 2] : vector<1x1x128xf32> to vector<1xf32>
      %136 = vector.shape_cast %135 : vector<1xf32> to vector<1x1x1xf32>
      %137 = vector.extract %136[0, 0, 0] : f32 from vector<1x1x1xf32>
      %138 = arith.mulf %40, %40 : vector<1x128xf32>
      %139 = vector.shape_cast %138 : vector<1x128xf32> to vector<1x1x128xf32>
      %cst_78 = arith.constant dense<0.000000e+00> : vector<1xf32>
      %140 = vector.multi_reduction <add>, %139, %cst_78 [1, 2] : vector<1x1x128xf32> to vector<1xf32>
      %141 = vector.shape_cast %140 : vector<1xf32> to vector<1x1x1xf32>
      %142 = vector.extract %141[0, 0, 0] : f32 from vector<1x1x1xf32>
      %cst_79 = arith.constant 3.200000e+01 : f32
      %143 = arith.mulf %cst_79, %142 : f32
      %cst_80 = arith.constant 2.000000e+00 : f32
      %cst_81 = arith.constant 3.200000e+01 : f32
      %144 = arith.mulf %cst_80, %cst_81 : f32
      %145 = arith.mulf %144, %137 : f32
      %146 = arith.subf %131, %145 : f32
      %147 = arith.mulf %143, %143 : f32
      %148 = arith.addf %146, %147 : f32
      %149 = arith.mulf %61, %61 : vector<1x128xf32>
      %150 = vector.shape_cast %149 : vector<1x128xf32> to vector<1x1x128xf32>
      %cst_82 = arith.constant dense<0.000000e+00> : vector<1xf32>
      %151 = vector.multi_reduction <add>, %150, %cst_82 [1, 2] : vector<1x1x128xf32> to vector<1xf32>
      %152 = vector.shape_cast %151 : vector<1xf32> to vector<1x1x1xf32>
      %153 = vector.extract %152[0, 0, 0] : f32 from vector<1x1x1xf32>
      %154 = arith.subf %148, %153 : f32
      %155 = arith.addf %125, %154 : f32
      %156 = arith.mulf %34, %34 : f32
      %157 = arith.mulf %155, %156 : f32
      %cst_83 = arith.constant 1.280000e+02 : f32
      %cst_84 = arith.constant 1.280000e+02 : f32
      %158 = arith.mulf %cst_83, %cst_84 : f32
      %159 = arith.divf %157, %158 : f32
      %cst_85 = arith.constant 1.000000e+00 : f32
      %160 = arith.mulf %cst_85, %96 : f32
      %cst_86 = arith.constant 1.000000e+00 : f32
      %161 = arith.mulf %cst_86, %89 : f32
      %162 = arith.addf %160, %161 : f32
      %cst_87 = arith.constant 1.000000e+00 : f32
      %163 = arith.mulf %cst_87, %159 : f32
      %164 = arith.addf %162, %163 : f32
      %c0_88 = arith.constant 0 : index
      %c0_89 = arith.constant 0 : index
      %165 = memref.load %arg3[%c0_88, %c0_89] : memref<1x1xf32, #tpu.memory_space<smem>>
      memref.store %164, %arg3[%c0_88, %c0_89] : memref<1x1xf32, #tpu.memory_space<smem>>
    } else {
    }
    return
  }
  func.func @transform_0(%arg0: i32) -> (i32, i32) {
    %c0_i32 = arith.constant 0 : i32
    %c0_i32_0 = arith.constant 0 : i32
    return %arg0, %c0_i32 : i32, i32
  }
  func.func @transform_1(%arg0: i32) -> (i32, i32) {
    %c0_i32 = arith.constant 0 : i32
    %c0_i32_0 = arith.constant 0 : i32
    return %arg0, %c0_i32 : i32, i32
  }
  func.func @transform_2(%arg0: i32) -> (i32, i32) {
    %c0_i32 = arith.constant 0 : i32
    %c0_i32_0 = arith.constant 0 : i32
    %c0_i32_1 = arith.constant 0 : i32
    return %c0_i32, %c0_i32_0 : i32, i32
  }
}

</mosaic_0001>

<llo_original>
// kernel: tpu_custom_call.1
$region0: #{tpu_custom_call.1}
  #allocation0 [shape = 'u32[]', space=smem, size = 0x4, offset = 0x4, fixed_abs, tag = 'smem constant byte address 0x4 - core index']
  #allocation1 [shape = 'u32[144,128]{1,0:T(1,128)}', space=vmem, size = 0x12000, scoped, tag = 'internal scratch']
  #allocation2 [shape = 'f32[1,128]{1,0:T(1,128)}', space=vmem, size = 0x200, scoped, tag = 'scratch operand']
  #allocation3 [shape = 'f32[1,128]{1,0:T(1,128)}', space=vmem, size = 0x200, scoped, tag = 'scratch operand']
  #allocation4 [shape = 'f32[1,128]{1,0:T(1,128)}', space=vmem, size = 0x200, scoped, tag = 'scratch operand']
  #allocation5 [shape = 'f32[128,128]{1,0:T(8,128)}', space=vmem, size = 0x10000, scoped, tag = 'scratch operand']
  #allocation6 [shape = 'f32[128,128]{1,0:T(8,128)}', space=vmem, size = 0x10000, scoped, tag = 'scratch operand']
  %s0 = inlined_call_operand.hbm [shape: f32[32,128], index: 0, kind: input, shape index: {}]
  %s1 = inlined_call_operand.hbm [shape: f32[32,128], index: 1, kind: input, shape index: {}]
  %s2 = inlined_call_operand.hbm [shape: f32[1,1], index: 2, kind: output, shape index: {}]
  %s3 = sld [smem:[#allocation0]]
  $region34: #{tpu_custom_call.1} parent=0
    _
  %s5 = ssub.s32 1, %s3
  %s6 = scalar_select 0, %s5, %s3
  $region1: #{tpu_custom_call.1} parent=0
    #allocation7 [shape = 'u8[16384]{0}', space=vmem, size = 0x4000, scoped, tag = 'input window, operand 0, single buffered']
    #allocation8 [shape = 's32[1]{0}', space=sflag, size = 0x4, scoped, tag = 'scoped memory for tpu_custom_call.1']
    #allocation9 [shape = 's32[1]{0}', space=sflag, size = 0x4, scoped, tag = 'scoped memory for tpu_custom_call.1']
    #allocation10 [shape = 'u8[16384]{0}', space=vmem, size = 0x4000, scoped, tag = 'input window, operand 1, single buffered']
    #allocation11 [shape = 's32[1]{0}', space=sflag, size = 0x4, scoped, tag = 'scoped memory for tpu_custom_call.1']
    #allocation12 [shape = 'u8[512]{0}', space=smem, size = 0x200, scoped, tag = 'output window, operand 0, single buffered']
    %7 = vsyncpa [#allocation8], 0
    %8 = vsyncpa [#allocation11], 0
    %9 = vsyncpa [#allocation9], 0
    // Predicated region
    $region2: #{tpu_custom_call.1} parent=1 // pred_check
      _
    $region3: #{tpu_custom_call.1} parent=1 // pred_check_branch
      %11 = sbr.rel (0) target = $region5
    $region4: #{tpu_custom_call.1} parent=1 // pred_region
      %s13 = ssub.s32 512, 512
      %14 = vsyncadd [#allocation8], %s13
      %s15 = sshll.u32 [#allocation7], 4
      %s16 = int_to_ptr.vmem [resolvable:$true] %s15
      %21 = dma.hbm_to_vmem [thread:$0]  %s0, 512, %s16, [#allocation8], 128, 128, 8
    $region5: #{tpu_custom_call.1} parent=1 // pred_fallthru
      _
    // Predicated region
    $region6: #{tpu_custom_call.1} parent=1 // pred_check
      _
    $region7: #{tpu_custom_call.1} parent=1 // pred_check_branch
      %23 = sbr.rel (0) target = $region9
    $region8: #{tpu_custom_call.1} parent=1 // pred_region
      %s25 = ssub.s32 512, 512
      %26 = vsyncadd [#allocation11], %s25
      %s27 = sshll.u32 [#allocation10], 4
      %s28 = int_to_ptr.vmem [resolvable:$true] %s27
      %33 = dma.hbm_to_vmem [thread:$0]  %s1, 512, %s28, [#allocation11], 128, 128, 8
    $region9: #{tpu_custom_call.1} parent=1 // pred_fallthru
      _
    // Predicated region
    $region10: #{tpu_custom_call.1} parent=1 // pred_check
      _
    $region11: #{tpu_custom_call.1} parent=1 // pred_check_branch
      %35 = sbr.rel (0) target = $region13
    $region12: #{tpu_custom_call.1} parent=1 // pred_region
      %36 = dma.done [#allocation8], 512
    $region13: #{tpu_custom_call.1} parent=1 // pred_fallthru
      _
    // Predicated region
    $region14: #{tpu_custom_call.1} parent=1 // pred_check
      _
    $region15: #{tpu_custom_call.1} parent=1 // pred_check_branch
      %38 = sbr.rel (0) target = $region17
    $region16: #{tpu_custom_call.1} parent=1 // pred_region
      %39 = dma.done [#allocation11], 512
    $region17: #{tpu_custom_call.1} parent=1 // pred_fallthru
      _
    %p40 = scmp.eq.s32.totalorder 0, 0
    // Predicated region
    $region18: #{tpu_custom_call.1} parent=1 // pred_check
      %p41 = pneg %p40
    $region19: #{tpu_custom_call.1} parent=1 // pred_check_branch
      %43 = sbr.rel (%p41) target = $region21
    $region20: #{tpu_custom_call.1} parent=1 // pred_region
      %44 = vst [vmem:[#allocation2] sm:$0x1] 0.0
      %45 = vst [vmem:[#allocation3] sm:$0x1] 0.0
      %46 = vst [vmem:[#allocation4] sm:$0x1] 0.0
      %47 = vst [vmem:[#allocation5] sm:$0xff] 0.0
      %48 = vst [vmem:[#allocation5 + $0x8] sm:$0xff] 0.0
      %49 = vst [vmem:[#allocation5 + $0x10] sm:$0xff] 0.0
      %50 = vst [vmem:[#allocation5 + $0x18] sm:$0xff] 0.0
      %51 = vst [vmem:[#allocation5 + $0x20] sm:$0xff] 0.0
      %52 = vst [vmem:[#allocation5 + $0x28] sm:$0xff] 0.0
      %53 = vst [vmem:[#allocation5 + $0x30] sm:$0xff] 0.0
      %54 = vst [vmem:[#allocation5 + $0x38] sm:$0xff] 0.0
      %55 = vst [vmem:[#allocation5 + $0x40] sm:$0xff] 0.0
      %56 = vst [vmem:[#allocation5 + $0x48] sm:$0xff] 0.0
      %57 = vst [vmem:[#allocation5 + $0x50] sm:$0xff] 0.0
      %58 = vst [vmem:[#allocation5 + $0x58] sm:$0xff] 0.0
      %59 = vst [vmem:[#allocation5 + $0x60] sm:$0xff] 0.0
      %60 = vst [vmem:[#allocation5 + $0x68] sm:$0xff] 0.0
      %61 = vst [vmem:[#allocation5 + $0x70] sm:$0xff] 0.0
      %62 = vst [vmem:[#allocation5 + $0x78] sm:$0xff] 0.0
      %63 = vst [vmem:[#allocation6] sm:$0xff] 0.0
      %64 = vst [vmem:[#allocation6 + $0x8] sm:$0xff] 0.0
      %65 = vst [vmem:[#allocation6 + $0x10] sm:$0xff] 0.0
      %66 = vst [vmem:[#allocation6 + $0x18] sm:$0xff] 0.0
      %67 = vst [vmem:[#allocation6 + $0x20] sm:$0xff] 0.0
      %68 = vst [vmem:[#allocation6 + $0x28] sm:$0xff] 0.0
      %69 = vst [vmem:[#allocation6 + $0x30] sm:$0xff] 0.0
      %70 = vst [vmem:[#allocation6 + $0x38] sm:$0xff] 0.0
      %71 = vst [vmem:[#allocation6 + $0x40] sm:$0xff] 0.0
      %72 = vst [vmem:[#allocation6 + $0x48] sm:$0xff] 0.0
      %73 = vst [vmem:[#allocation6 + $0x50] sm:$0xff] 0.0
      %74 = vst [vmem:[#allocation6 + $0x58] sm:$0xff] 0.0
      %75 = vst [vmem:[#allocation6 + $0x60] sm:$0xff] 0.0
      %76 = vst [vmem:[#allocation6 + $0x68] sm:$0xff] 0.0
      %77 = vst [vmem:[#allocation6 + $0x70] sm:$0xff] 0.0
      %78 = vst [vmem:[#allocation6 + $0x78] sm:$0xff] 0.0
    $region21: #{tpu_custom_call.1} parent=1 // pred_fallthru
      _
    %v79 = vld [vmem:[#allocation7] sm:$0xff]
    %v80 = vld [vmem:[#allocation7 + $0x8] sm:$0xff]
    %v81 = vld [vmem:[#allocation7 + $0x10] sm:$0xff]
    %v82 = vld [vmem:[#allocation7 + $0x18] sm:$0xff]
    %v83 = vld [vmem:[#allocation10] sm:$0xff]
    %v84 = vld [vmem:[#allocation10 + $0x8] sm:$0xff]
    %v85 = vld [vmem:[#allocation10 + $0x10] sm:$0xff]
    %v86 = vld [vmem:[#allocation10 + $0x18] sm:$0xff]
    %v87 = vsub.f32 %v79, %v83
    %v88 = vsub.f32 %v80, %v84
    %v89 = vsub.f32 %v81, %v85
    %v90 = vsub.f32 %v82, %v86
    %v91 = vld [vmem:[#allocation4] sm:$0x1]
    %v92 = vmul.f32 %v87, %v87
    %v93 = vmul.f32 %v88, %v88
    %v94 = vmul.f32 %v89, %v89
    %v95 = vmul.f32 %v90, %v90
    %v96 = vadd.f32 %v92, %v93
    %v97 = vadd.f32 %v96, %v94
    %v98 = vadd.f32 %v97, %v95
    %v99 = vrot.slane %v98, 4
    %v100 = vadd.f32 %v98, %v99
    %v101 = vrot.slane %v100, 2
    %v102 = vadd.f32 %v100, %v101
    %v103 = vrot.slane %v102, 1
    %v104 = vadd.f32 %v102, %v103
    %v105 = vadd.f32 %v91, %v104
    %106 = vst [vmem:[#allocation4] sm:$0x1] %v105
    %v107 = vld [vmem:[#allocation2] sm:$0x1]
    %v108 = vadd.f32 %v79, %v80
    %v109 = vadd.f32 %v108, %v81
    %v110 = vadd.f32 %v109, %v82
    %v111 = vrot.slane %v110, 4
    %v112 = vadd.f32 %v110, %v111
    %v113 = vrot.slane %v112, 2
    %v114 = vadd.f32 %v112, %v113
    %v115 = vrot.slane %v114, 1
    %v116 = vadd.f32 %v114, %v115
    %v117 = vadd.f32 %v107, %v116
    %118 = vst [vmem:[#allocation2] sm:$0x1] %v117
    %v119 = vld [vmem:[#allocation3] sm:$0x1]
    %v120 = vadd.f32 %v83, %v84
    %v121 = vadd.f32 %v120, %v85
    %v122 = vadd.f32 %v121, %v86
    %v123 = vrot.slane %v122, 4
    %v124 = vadd.f32 %v122, %v123
    %v125 = vrot.slane %v124, 2
    %v126 = vadd.f32 %v124, %v125
    %v127 = vrot.slane %v126, 1
    %v128 = vadd.f32 %v126, %v127
    %v129 = vadd.f32 %v119, %v128
    %130 = vst [vmem:[#allocation3] sm:$0x1] %v129
    %v131 = vld [vmem:[#allocation5] sm:$0xff]
    %v132 = vld [vmem:[#allocation5 + $0x8] sm:$0xff]
    %v133 = vld [vmem:[#allocation5 + $0x10] sm:$0xff]
    %v134 = vld [vmem:[#allocation5 + $0x18] sm:$0xff]
    %v135 = vld [vmem:[#allocation5 + $0x20] sm:$0xff]
    %v136 = vld [vmem:[#allocation5 + $0x28] sm:$0xff]
    %v137 = vld [vmem:[#allocation5 + $0x30] sm:$0xff]
    %v138 = vld [vmem:[#allocation5 + $0x38] sm:$0xff]
    %v139 = vld [vmem:[#allocation5 + $0x40] sm:$0xff]
    %v140 = vld [vmem:[#allocation5 + $0x48] sm:$0xff]
    %v141 = vld [vmem:[#allocation5 + $0x50] sm:$0xff]
    %v142 = vld [vmem:[#allocation5 + $0x58] sm:$0xff]
    %v143 = vld [vmem:[#allocation5 + $0x60] sm:$0xff]
    %v144 = vld [vmem:[#allocation5 + $0x68] sm:$0xff]
    %v145 = vld [vmem:[#allocation5 + $0x70] sm:$0xff]
    %v146 = vld [vmem:[#allocation5 + $0x78] sm:$0xff]
    %147 = vxpose.xlu0.b32.start [1/16] %v79, 128
    %148 = vxpose.xlu0.b32.cont [2/16] %v80, 128
    %149 = vxpose.xlu0.b32.cont [3/16] %v81, 128
    %150 = vxpose.xlu0.b32.cont [4/16] %v82, 128
    %151 = vxpose.xlu0.b32.cont [5/16] 0.0, 128
    %152 = vxpose.xlu0.b32.cont [6/16] 0.0, 128
    %153 = vxpose.xlu0.b32.cont [7/16] 0.0, 128
    %154 = vxpose.xlu0.b32.cont [8/16] 0.0, 128
    %155 = vxpose.xlu0.b32.cont [9/16] 0.0, 128
    %156 = vxpose.xlu0.b32.cont [10/16] 0.0, 128
    %157 = vxpose.xlu0.b32.cont [11/16] 0.0, 128
    %158 = vxpose.xlu0.b32.cont [12/16] 0.0, 128
    %159 = vxpose.xlu0.b32.cont [13/16] 0.0, 128
    %160 = vxpose.xlu0.b32.cont [14/16] 0.0, 128
    %161 = vxpose.xlu0.b32.cont [15/16] 0.0, 128
    %162 = vxpose.xlu0.b32.end [16/16] 0.0, 128
    %v163 = vpop.trf.xlu0
    %v164 = vpop.trf.xlu0
    %v165 = vpop.trf.xlu0
    %v166 = vpop.trf.xlu0
    %v167 = vpop.trf.xlu0
    %v168 = vpop.trf.xlu0
    %v169 = vpop.trf.xlu0
    %v170 = vpop.trf.xlu0
    %v171 = vpop.trf.xlu0
    %v172 = vpop.trf.xlu0
    %v173 = vpop.trf.xlu0
    %v174 = vpop.trf.xlu0
    %v175 = vpop.trf.xlu0
    %v176 = vpop.trf.xlu0
    %v177 = vpop.trf.xlu0
    %v178 = vpop.trf.xlu0
    %vm179 = vcmask 261120
    %v181 = vsel %vm179, %v163, 0
    %v184 = vsel %vm179, %v164, 0
    %v187 = vsel %vm179, %v165, 0
    %v190 = vsel %vm179, %v166, 0
    %v193 = vsel %vm179, %v167, 0
    %v196 = vsel %vm179, %v168, 0
    %v199 = vsel %vm179, %v169, 0
    %v202 = vsel %vm179, %v170, 0
    %v205 = vsel %vm179, %v171, 0
    %v208 = vsel %vm179, %v172, 0
    %v211 = vsel %vm179, %v173, 0
    %v214 = vsel %vm179, %v174, 0
    %v217 = vsel %vm179, %v175, 0
    %v220 = vsel %vm179, %v176, 0
    %v223 = vsel %vm179, %v177, 0
    %v226 = vsel %vm179, %v178, 0
    %228 = vmatprep.subr.mxu0 0.0
    %229 = vmatpush1.msra.mxu0 %v79
    %230 = vmatprep.subr.mxu0 0.0
    %231 = vmatpush1.msra.mxu0 %v80
    %232 = vmatprep.subr.mxu0 0.0
    %233 = vmatpush1.msra.mxu0 %v81
    %234 = vmatprep.subr.mxu0 0.0
    %235 = vmatpush1.msra.mxu0 %v82
    %236 = vmatprep.subr.mxu0 0.0
    %237 = vmatpush1.msra.mxu0 0.0
    %238 = vmatprep.subr.mxu0 0.0
    %239 = vmatpush1.msra.mxu0 0.0
    %240 = vmatprep.subr.mxu0 0.0
    %241 = vmatpush1.msra.mxu0 0.0
    %242 = vmatprep.subr.mxu0 0.0
    %243 = vmatpush1.msra.mxu0 0.0
    %244 = vmatprep.subr.mxu0 0.0
    %245 = vmatpush1.msra.mxu0 0.0
    %246 = vmatprep.subr.mxu0 0.0
    %247 = vmatpush1.msra.mxu0 0.0
    %248 = vmatprep.subr.mxu0 0.0
    %249 = vmatpush1.msra.mxu0 0.0
    %250 = vmatprep.subr.mxu0 0.0
    %251 = vmatpush1.msra.mxu0 0.0
    %252 = vmatprep.subr.mxu0 0.0
    %253 = vmatpush1.msra.mxu0 0.0
    %254 = vmatprep.subr.mxu0 0.0
    %255 = vmatpush1.msra.mxu0 0.0
    %256 = vmatprep.subr.mxu0 0.0
    %257 = vmatpush1.msra.mxu0 0.0
    %258 = vmatprep.subr.mxu0 0.0
    %259 = vmatpush1.msra.mxu0 0.0
    %260 = vmatprep.subr.mxu0 0.0
    %261 = vmatpush1.msra.mxu0 0.0
    %262 = vmatprep.subr.mxu0 0.0
    %263 = vmatpush1.msra.mxu0 0.0
    %264 = vmatprep.subr.mxu0 0.0
    %265 = vmatpush1.msra.mxu0 0.0
    %266 = vmatprep.subr.mxu0 0.0
    %267 = vmatpush1.msra.mxu0 0.0
    %268 = vmatprep.subr.mxu0 0.0
    %269 = vmatpush1.msra.mxu0 0.0
    %270 = vmatprep.subr.mxu0 0.0
    %271 = vmatpush1.msra.mxu0 0.0
    %272 = vmatprep.subr.mxu0 0.0
    %273 = vmatpush1.msra.mxu0 0.0
    %274 = vmatprep.subr.mxu0 0.0
    %275 = vmatpush1.msra.mxu0 0.0
    %276 = vmatprep.subr.mxu0 0.0
    %277 = vmatpush1.msra.mxu0 0.0
    %278 = vmatprep.subr.mxu0 0.0
    %279 = vmatpush1.msra.mxu0 0.0
    %280 = vmatprep.subr.mxu0 0.0
    %281 = vmatpush1.msra.mxu0 0.0
    %282 = vmatprep.subr.mxu0 0.0
    %283 = vmatpush1.msra.mxu0 0.0
    %284 = vmatprep.subr.mxu0 0.0
    %285 = vmatpush1.msra.mxu0 0.0
    %286 = vmatprep.subr.mxu0 0.0
    %287 = vmatpush1.msra.mxu0 0.0
    %288 = vmatprep.subr.mxu0 0.0
    %289 = vmatpush1.msra.mxu0 0.0
    %290 = vmatprep.subr.mxu0 0.0
    %291 = vmatpush1.msra.mxu0 0.0
    %292 = vmatprep.mubr.f32.mxu0 0.0
    %293 = vmatmul.mubr.f32.gmra.mrb[0].mxu0 %v181
    %v294 = vpop.f32.mrb[0].mxu0
    %v295 = vadd.f32 0.0, %v294
    %v296 = vpop.f32.mrb[0].mxu0
    %297 = vmatprep.mubr.f32.mxu0 0.0
    %298 = vmatmul.mubr.f32.gmra.mrb[0].mxu0 %v184
    %v299 = vpop.f32.mrb[0].mxu0
    %v300 = vadd.f32 0.0, %v299
    %v301 = vpop.f32.mrb[0].mxu0
    %302 = vmatprep.mubr.f32.mxu0 0.0
    %303 = vmatmul.mubr.f32.gmra.mrb[0].mxu0 %v187
    %v304 = vpop.f32.mrb[0].mxu0
    %v305 = vadd.f32 0.0, %v304
    %v306 = vpop.f32.mrb[0].mxu0
    %307 = vmatprep.mubr.f32.mxu0 0.0
    %308 = vmatmul.mubr.f32.gmra.mrb[0].mxu0 %v190
    %v309 = vpop.f32.mrb[0].mxu0
    %v310 = vadd.f32 0.0, %v309
    %v311 = vpop.f32.mrb[0].mxu0
    %312 = vmatprep.mubr.f32.mxu0 0.0
    %313 = vmatmul.mubr.f32.gmra.mrb[0].mxu0 %v193
    %v314 = vpop.f32.mrb[0].mxu0
    %v315 = vadd.f32 0.0, %v314
    %v316 = vpop.f32.mrb[0].mxu0
    %317 = vmatprep.mubr.f32.mxu0 0.0
    %318 = vmatmul.mubr.f32.gmra.mrb[0].mxu0 %v196
    %v319 = vpop.f32.mrb[0].mxu0
    %v320 = vadd.f32 0.0, %v319
    %v321 = vpop.f32.mrb[0].mxu0
    %322 = vmatprep.mubr.f32.mxu0 0.0
    %323 = vmatmul.mubr.f32.gmra.mrb[0].mxu0 %v199
    %v324 = vpop.f32.mrb[0].mxu0
    %v325 = vadd.f32 0.0, %v324
    %v326 = vpop.f32.mrb[0].mxu0
    %327 = vmatprep.mubr.f32.mxu0 0.0
    %328 = vmatmul.mubr.f32.gmra.mrb[0].mxu0 %v202
    %v329 = vpop.f32.mrb[0].mxu0
    %v330 = vadd.f32 0.0, %v329
    %v331 = vpop.f32.mrb[0].mxu0
    %332 = vmatprep.mubr.f32.mxu0 0.0
    %333 = vmatmul.mubr.f32.gmra.mrb[0].mxu0 %v205
    %v334 = vpop.f32.mrb[0].mxu0
    %v335 = vadd.f32 0.0, %v334
    %v336 = vpop.f32.mrb[0].mxu0
    %337 = vmatprep.mubr.f32.mxu0 0.0
    %338 = vmatmul.mubr.f32.gmra.mrb[0].mxu0 %v208
    %v339 = vpop.f32.mrb[0].mxu0
    %v340 = vadd.f32 0.0, %v339
    %v341 = vpop.f32.mrb[0].mxu0
    %342 = vmatprep.mubr.f32.mxu0 0.0
    %343 = vmatmul.mubr.f32.gmra.mrb[0].mxu0 %v211
    %v344 = vpop.f32.mrb[0].mxu0
    %v345 = vadd.f32 0.0, %v344
    %v346 = vpop.f32.mrb[0].mxu0
    %347 = vmatprep.mubr.f32.mxu0 0.0
    %348 = vmatmul.mubr.f32.gmra.mrb[0].mxu0 %v214
    %v349 = vpop.f32.mrb[0].mxu0
    %v350 = vadd.f32 0.0, %v349
    %v351 = vpop.f32.mrb[0].mxu0
    %352 = vmatprep.mubr.f32.mxu0 0.0
    %353 = vmatmul.mubr.f32.gmra.mrb[0].mxu0 %v217
    %v354 = vpop.f32.mrb[0].mxu0
    %v355 = vadd.f32 0.0, %v354
    %v356 = vpop.f32.mrb[0].mxu0
    %357 = vmatprep.mubr.f32.mxu0 0.0
    %358 = vmatmul.mubr.f32.gmra.mrb[0].mxu0 %v220
    %v359 = vpop.f32.mrb[0].mxu0
    %v360 = vadd.f32 0.0, %v359
    %v361 = vpop.f32.mrb[0].mxu0
    %362 = vmatprep.mubr.f32.mxu0 0.0
    %363 = vmatmul.mubr.f32.gmra.mrb[0].mxu0 %v223
    %v364 = vpop.f32.mrb[0].mxu0
    %v365 = vadd.f32 0.0, %v364
    %v366 = vpop.f32.mrb[0].mxu0
    %367 = vmatprep.mubr.f32.mxu0 0.0
    %368 = vmatmul.mubr.f32.gmra.mrb[0].mxu0 %v226
    %v369 = vpop.f32.mrb[0].mxu0
    %v370 = vadd.f32 0.0, %v369
    %v371 = vpop.f32.mrb[0].mxu0
    %372 = vdwg.mxu0
    %v373 = vadd.f32 %v131, %v295
    %v374 = vadd.f32 %v132, %v300
    %v375 = vadd.f32 %v133, %v305
    %v376 = vadd.f32 %v134, %v310
    %v377 = vadd.f32 %v135, %v315
    %v378 = vadd.f32 %v136, %v320
    %v379 = vadd.f32 %v137, %v325
    %v380 = vadd.f32 %v138, %v330
    %v381 = vadd.f32 %v139, %v335
    %v382 = vadd.f32 %v140, %v340
    %v383 = vadd.f32 %v141, %v345
    %v384 = vadd.f32 %v142, %v350
    %v385 = vadd.f32 %v143, %v355
    %v386 = vadd.f32 %v144, %v360
    %v387 = vadd.f32 %v145, %v365
    %v388 = vadd.f32 %v146, %v370
    %389 = vst [vmem:[#allocation5] sm:$0xff] %v373
    %390 = vst [vmem:[#allocation5 + $0x8] sm:$0xff] %v374
    %391 = vst [vmem:[#allocation5 + $0x10] sm:$0xff] %v375
    %392 = vst [vmem:[#allocation5 + $0x18] sm:$0xff] %v376
    %393 = vst [vmem:[#allocation5 + $0x20] sm:$0xff] %v377
    %394 = vst [vmem:[#allocation5 + $0x28] sm:$0xff] %v378
    %395 = vst [vmem:[#allocation5 + $0x30] sm:$0xff] %v379
    %396 = vst [vmem:[#allocation5 + $0x38] sm:$0xff] %v380
    %397 = vst [vmem:[#allocation5 + $0x40] sm:$0xff] %v381
    %398 = vst [vmem:[#allocation5 + $0x48] sm:$0xff] %v382
    %399 = vst [vmem:[#allocation5 + $0x50] sm:$0xff] %v383
    %400 = vst [vmem:[#allocation5 + $0x58] sm:$0xff] %v384
    %401 = vst [vmem:[#allocation5 + $0x60] sm:$0xff] %v385
    %402 = vst [vmem:[#allocation5 + $0x68] sm:$0xff] %v386
    %403 = vst [vmem:[#allocation5 + $0x70] sm:$0xff] %v387
    %404 = vst [vmem:[#allocation5 + $0x78] sm:$0xff] %v388
    %v405 = vld [vmem:[#allocation6] sm:$0xff]
    %v406 = vld [vmem:[#allocation6 + $0x8] sm:$0xff]
    %v407 = vld [vmem:[#allocation6 + $0x10] sm:$0xff]
    %v408 = vld [vmem:[#allocation6 + $0x18] sm:$0xff]
    %v409 = vld [vmem:[#allocation6 + $0x20] sm:$0xff]
    %v410 = vld [vmem:[#allocation6 + $0x28] sm:$0xff]
    %v411 = vld [vmem:[#allocation6 + $0x30] sm:$0xff]
    %v412 = vld [vmem:[#allocation6 + $0x38] sm:$0xff]
    %v413 = vld [vmem:[#allocation6 + $0x40] sm:$0xff]
    %v414 = vld [vmem:[#allocation6 + $0x48] sm:$0xff]
    %v415 = vld [vmem:[#allocation6 + $0x50] sm:$0xff]
    %v416 = vld [vmem:[#allocation6 + $0x58] sm:$0xff]
    %v417 = vld [vmem:[#allocation6 + $0x60] sm:$0xff]
    %v418 = vld [vmem:[#allocation6 + $0x68] sm:$0xff]
    %v419 = vld [vmem:[#allocation6 + $0x70] sm:$0xff]
    %v420 = vld [vmem:[#allocation6 + $0x78] sm:$0xff]
    %421 = vxpose.xlu0.b32.start [1/16] %v83, 128
    %422 = vxpose.xlu0.b32.cont [2/16] %v84, 128
    %423 = vxpose.xlu0.b32.cont [3/16] %v85, 128
    %424 = vxpose.xlu0.b32.cont [4/16] %v86, 128
    %425 = vxpose.xlu0.b32.cont [5/16] 0.0, 128
    %426 = vxpose.xlu0.b32.cont [6/16] 0.0, 128
    %427 = vxpose.xlu0.b32.cont [7/16] 0.0, 128
    %428 = vxpose.xlu0.b32.cont [8/16] 0.0, 128
    %429 = vxpose.xlu0.b32.cont [9/16] 0.0, 128
    %430 = vxpose.xlu0.b32.cont [10/16] 0.0, 128
    %431 = vxpose.xlu0.b32.cont [11/16] 0.0, 128
    %432 = vxpose.xlu0.b32.cont [12/16] 0.0, 128
    %433 = vxpose.xlu0.b32.cont [13/16] 0.0, 128
    %434 = vxpose.xlu0.b32.cont [14/16] 0.0, 128
    %435 = vxpose.xlu0.b32.cont [15/16] 0.0, 128
    %436 = vxpose.xlu0.b32.end [16/16] 0.0, 128
    %v437 = vpop.trf.xlu0
    %v438 = vpop.trf.xlu0
    %v439 = vpop.trf.xlu0
    %v440 = vpop.trf.xlu0
    %v441 = vpop.trf.xlu0
    %v442 = vpop.trf.xlu0
    %v443 = vpop.trf.xlu0
    %v444 = vpop.trf.xlu0
    %v445 = vpop.trf.xlu0
    %v446 = vpop.trf.xlu0
    %v447 = vpop.trf.xlu0
    %v448 = vpop.trf.xlu0
    %v449 = vpop.trf.xlu0
    %v450 = vpop.trf.xlu0
    %v451 = vpop.trf.xlu0
    %v452 = vpop.trf.xlu0
    %v454 = vsel %vm179, %v437, 0
    %v457 = vsel %vm179, %v438, 0
    %v460 = vsel %vm179, %v439, 0
    %v463 = vsel %vm179, %v440, 0
    %v466 = vsel %vm179, %v441, 0
    %v469 = vsel %vm179, %v442, 0
    %v472 = vsel %vm179, %v443, 0
    %v475 = vsel %vm179, %v444, 0
    %v478 = vsel %vm179, %v445, 0
    %v481 = vsel %vm179, %v446, 0
    %v484 = vsel %vm179, %v447, 0
    %v487 = vsel %vm179, %v448, 0
    %v490 = vsel %vm179, %v449, 0
    %v493 = vsel %vm179, %v450, 0
    %v496 = vsel %vm179, %v451, 0
    %v499 = vsel %vm179, %v452, 0
    %501 = vmatprep.subr.mxu0 0.0
    %502 = vmatpush1.msra.mxu0 %v83
    %503 = vmatprep.subr.mxu0 0.0
    %504 = vmatpush1.msra.mxu0 %v84
    %505 = vmatprep.subr.mxu0 0.0
    %506 = vmatpush1.msra.mxu0 %v85
    %507 = vmatprep.subr.mxu0 0.0
    %508 = vmatpush1.msra.mxu0 %v86
    %509 = vmatprep.subr.mxu0 0.0
    %510 = vmatpush1.msra.mxu0 0.0
    %511 = vmatprep.subr.mxu0 0.0
    %512 = vmatpush1.msra.mxu0 0.0
    %513 = vmatprep.subr.mxu0 0.0
    %514 = vmatpush1.msra.mxu0 0.0
    %515 = vmatprep.subr.mxu0 0.0
    %516 = vmatpush1.msra.mxu0 0.0
    %517 = vmatprep.subr.mxu0 0.0
    %518 = vmatpush1.msra.mxu0 0.0
    %519 = vmatprep.subr.mxu0 0.0
    %520 = vmatpush1.msra.mxu0 0.0
    %521 = vmatprep.subr.mxu0 0.0
    %522 = vmatpush1.msra.mxu0 0.0
    %523 = vmatprep.subr.mxu0 0.0
    %524 = vmatpush1.msra.mxu0 0.0
    %525 = vmatprep.subr.mxu0 0.0
    %526 = vmatpush1.msra.mxu0 0.0
    %527 = vmatprep.subr.mxu0 0.0
    %528 = vmatpush1.msra.mxu0 0.0
    %529 = vmatprep.subr.mxu0 0.0
    %530 = vmatpush1.msra.mxu0 0.0
    %531 = vmatprep.subr.mxu0 0.0
    %532 = vmatpush1.msra.mxu0 0.0
    %533 = vmatprep.subr.mxu0 0.0
    %534 = vmatpush1.msra.mxu0 0.0
    %535 = vmatprep.subr.mxu0 0.0
    %536 = vmatpush1.msra.mxu0 0.0
    %537 = vmatprep.subr.mxu0 0.0
    %538 = vmatpush1.msra.mxu0 0.0
    %539 = vmatprep.subr.mxu0 0.0
    %540 = vmatpush1.msra.mxu0 0.0
    %541 = vmatprep.subr.mxu0 0.0
    %542 = vmatpush1.msra.mxu0 0.0
    %543 = vmatprep.subr.mxu0 0.0
    %544 = vmatpush1.msra.mxu0 0.0
    %545 = vmatprep.subr.mxu0 0.0
    %546 = vmatpush1.msra.mxu0 0.0
    %547 = vmatprep.subr.mxu0 0.0
    %548 = vmatpush1.msra.mxu0 0.0
    %549 = vmatprep.subr.mxu0 0.0
    %550 = vmatpush1.msra.mxu0 0.0
    %551 = vmatprep.subr.mxu0 0.0
    %552 = vmatpush1.msra.mxu0 0.0
    %553 = vmatprep.subr.mxu0 0.0
    %554 = vmatpush1.msra.mxu0 0.0
    %555 = vmatprep.subr.mxu0 0.0
    %556 = vmatpush1.msra.mxu0 0.0
    %557 = vmatprep.subr.mxu0 0.0
    %558 = vmatpush1.msra.mxu0 0.0
    %559 = vmatprep.subr.mxu0 0.0
    %560 = vmatpush1.msra.mxu0 0.0
    %561 = vmatprep.subr.mxu0 0.0
    %562 = vmatpush1.msra.mxu0 0.0
    %563 = vmatprep.subr.mxu0 0.0
    %564 = vmatpush1.msra.mxu0 0.0
    %565 = vmatprep.mubr.f32.mxu0 0.0
    %566 = vmatmul.mubr.f32.gmra.mrb[0].mxu0 %v454
    %v567 = vpop.f32.mrb[0].mxu0
    %v568 = vadd.f32 0.0, %v567
    %v569 = vpop.f32.mrb[0].mxu0
    %570 = vmatprep.mubr.f32.mxu0 0.0
    %571 = vmatmul.mubr.f32.gmra.mrb[0].mxu0 %v457
    %v572 = vpop.f32.mrb[0].mxu0
    %v573 = vadd.f32 0.0, %v572
    %v574 = vpop.f32.mrb[0].mxu0
    %575 = vmatprep.mubr.f32.mxu0 0.0
    %576 = vmatmul.mubr.f32.gmra.mrb[0].mxu0 %v460
    %v577 = vpop.f32.mrb[0].mxu0
    %v578 = vadd.f32 0.0, %v577
    %v579 = vpop.f32.mrb[0].mxu0
    %580 = vmatprep.mubr.f32.mxu0 0.0
    %581 = vmatmul.mubr.f32.gmra.mrb[0].mxu0 %v463
    %v582 = vpop.f32.mrb[0].mxu0
    %v583 = vadd.f32 0.0, %v582
    %v584 = vpop.f32.mrb[0].mxu0
    %585 = vmatprep.mubr.f32.mxu0 0.0
    %586 = vmatmul.mubr.f32.gmra.mrb[0].mxu0 %v466
    %v587 = vpop.f32.mrb[0].mxu0
    %v588 = vadd.f32 0.0, %v587
    %v589 = vpop.f32.mrb[0].mxu0
    %590 = vmatprep.mubr.f32.mxu0 0.0
    %591 = vmatmul.mubr.f32.gmra.mrb[0].mxu0 %v469
    %v592 = vpop.f32.mrb[0].mxu0
    %v593 = vadd.f32 0.0, %v592
    %v594 = vpop.f32.mrb[0].mxu0
    %595 = vmatprep.mubr.f32.mxu0 0.0
    %596 = vmatmul.mubr.f32.gmra.mrb[0].mxu0 %v472
    %v597 = vpop.f32.mrb[0].mxu0
    %v598 = vadd.f32 0.0, %v597
    %v599 = vpop.f32.mrb[0].mxu0
    %600 = vmatprep.mubr.f32.mxu0 0.0
    %601 = vmatmul.mubr.f32.gmra.mrb[0].mxu0 %v475
    %v602 = vpop.f32.mrb[0].mxu0
    %v603 = vadd.f32 0.0, %v602
    %v604 = vpop.f32.mrb[0].mxu0
    %605 = vmatprep.mubr.f32.mxu0 0.0
    %606 = vmatmul.mubr.f32.gmra.mrb[0].mxu0 %v478
    %v607 = vpop.f32.mrb[0].mxu0
    %v608 = vadd.f32 0.0, %v607
    %v609 = vpop.f32.mrb[0].mxu0
    %610 = vmatprep.mubr.f32.mxu0 0.0
    %611 = vmatmul.mubr.f32.gmra.mrb[0].mxu0 %v481
    %v612 = vpop.f32.mrb[0].mxu0
    %v613 = vadd.f32 0.0, %v612
    %v614 = vpop.f32.mrb[0].mxu0
    %615 = vmatprep.mubr.f32.mxu0 0.0
    %616 = vmatmul.mubr.f32.gmra.mrb[0].mxu0 %v484
    %v617 = vpop.f32.mrb[0].mxu0
    %v618 = vadd.f32 0.0, %v617
    %v619 = vpop.f32.mrb[0].mxu0
    %620 = vmatprep.mubr.f32.mxu0 0.0
    %621 = vmatmul.mubr.f32.gmra.mrb[0].mxu0 %v487
    %v622 = vpop.f32.mrb[0].mxu0
    %v623 = vadd.f32 0.0, %v622
    %v624 = vpop.f32.mrb[0].mxu0
    %625 = vmatprep.mubr.f32.mxu0 0.0
    %626 = vmatmul.mubr.f32.gmra.mrb[0].mxu0 %v490
    %v627 = vpop.f32.mrb[0].mxu0
    %v628 = vadd.f32 0.0, %v627
    %v629 = vpop.f32.mrb[0].mxu0
    %630 = vmatprep.mubr.f32.mxu0 0.0
    %631 = vmatmul.mubr.f32.gmra.mrb[0].mxu0 %v493
    %v632 = vpop.f32.mrb[0].mxu0
    %v633 = vadd.f32 0.0, %v632
    %v634 = vpop.f32.mrb[0].mxu0
    %635 = vmatprep.mubr.f32.mxu0 0.0
    %636 = vmatmul.mubr.f32.gmra.mrb[0].mxu0 %v496
    %v637 = vpop.f32.mrb[0].mxu0
    %v638 = vadd.f32 0.0, %v637
    %v639 = vpop.f32.mrb[0].mxu0
    %640 = vmatprep.mubr.f32.mxu0 0.0
    %641 = vmatmul.mubr.f32.gmra.mrb[0].mxu0 %v499
    %v642 = vpop.f32.mrb[0].mxu0
    %v643 = vadd.f32 0.0, %v642
    %v644 = vpop.f32.mrb[0].mxu0
    %645 = vdwg.mxu0
    %v646 = vadd.f32 %v405, %v568
    %v647 = vadd.f32 %v406, %v573
    %v648 = vadd.f32 %v407, %v578
    %v649 = vadd.f32 %v408, %v583
    %v650 = vadd.f32 %v409, %v588
    %v651 = vadd.f32 %v410, %v593
    %v652 = vadd.f32 %v411, %v598
    %v653 = vadd.f32 %v412, %v603
    %v654 = vadd.f32 %v413, %v608
    %v655 = vadd.f32 %v414, %v613
    %v656 = vadd.f32 %v415, %v618
    %v657 = vadd.f32 %v416, %v623
    %v658 = vadd.f32 %v417, %v628
    %v659 = vadd.f32 %v418, %v633
    %v660 = vadd.f32 %v419, %v638
    %v661 = vadd.f32 %v420, %v643
    %662 = vst [vmem:[#allocation6] sm:$0xff] %v646
    %663 = vst [vmem:[#allocation6 + $0x8] sm:$0xff] %v647
    %664 = vst [vmem:[#allocation6 + $0x10] sm:$0xff] %v648
    %665 = vst [vmem:[#allocation6 + $0x18] sm:$0xff] %v649
    %666 = vst [vmem:[#allocation6 + $0x20] sm:$0xff] %v650
    %667 = vst [vmem:[#allocation6 + $0x28] sm:$0xff] %v651
    %668 = vst [vmem:[#allocation6 + $0x30] sm:$0xff] %v652
    %669 = vst [vmem:[#allocation6 + $0x38] sm:$0xff] %v653
    %670 = vst [vmem:[#allocation6 + $0x40] sm:$0xff] %v654
    %671 = vst [vmem:[#allocation6 + $0x48] sm:$0xff] %v655
    %672 = vst [vmem:[#allocation6 + $0x50] sm:$0xff] %v656
    %673 = vst [vmem:[#allocation6 + $0x58] sm:$0xff] %v657
    %674 = vst [vmem:[#allocation6 + $0x60] sm:$0xff] %v658
    %675 = vst [vmem:[#allocation6 + $0x68] sm:$0xff] %v659
    %676 = vst [vmem:[#allocation6 + $0x70] sm:$0xff] %v660
    %677 = vst [vmem:[#allocation6 + $0x78] sm:$0xff] %v661
    // Predicated region
    $region22: #{tpu_custom_call.1} parent=1 // pred_check
      %p678 = pneg %p40
    $region23: #{tpu_custom_call.1} parent=1 // pred_check_branch
      %680 = sbr.rel (%p678) target = $region25
    $region24: #{tpu_custom_call.1} parent=1 // pred_region
      %v681 = vld [vmem:[#allocation2] sm:$0x1]
      %v682 = vrcp.pop 32.0
      %v683 = vmul.f32 %v681, %v682
      %v684 = vld [vmem:[#allocation3] sm:$0x1]
      %v685 = vmul.f32 %v684, %v682
      %v686 = vlaneseq
      %v687 = vshrl.u32 %v686, 7
      %v688 = vadd.s32 %v687, 8
      %v689 = vadd.s32 %v687, 16
      %v690 = vadd.s32 %v687, 24
      %v691 = vadd.s32 %v687, 32
      %v692 = vadd.s32 %v687, 40
      %v693 = vadd.s32 %v687, 48
      %v694 = vadd.s32 %v687, 56
      %v695 = vadd.s32 %v687, 64
      %v696 = vadd.s32 %v687, 72
      %v697 = vadd.s32 %v687, 80
      %v698 = vadd.s32 %v687, 88
      %v699 = vadd.s32 %v687, 96
      %v700 = vadd.s32 %v687, 104
      %v701 = vadd.s32 %v687, 112
      %v702 = vadd.s32 %v687, 120
      %v703 = vlaneseq
      %v704 = vand.u32 %v703, 127
      %vm705 = vcmp.eq.s32.totalorder %v687, %v704
      %vm706 = vcmp.eq.s32.totalorder %v688, %v704
      %vm707 = vcmp.eq.s32.totalorder %v689, %v704
      %vm708 = vcmp.eq.s32.totalorder %v690, %v704
      %vm709 = vcmp.eq.s32.totalorder %v691, %v704
      %vm710 = vcmp.eq.s32.totalorder %v692, %v704
      %vm711 = vcmp.eq.s32.totalorder %v693, %v704
      %vm712 = vcmp.eq.s32.totalorder %v694, %v704
      %vm713 = vcmp.eq.s32.totalorder %v695, %v704
      %vm714 = vcmp.eq.s32.totalorder %v696, %v704
      %vm715 = vcmp.eq.s32.totalorder %v697, %v704
      %vm716 = vcmp.eq.s32.totalorder %v698, %v704
      %vm717 = vcmp.eq.s32.totalorder %v699, %v704
      %vm718 = vcmp.eq.s32.totalorder %v700, %v704
      %vm719 = vcmp.eq.s32.totalorder %v701, %v704
      %vm720 = vcmp.eq.s32.totalorder %v702, %v704
      %v721 = vld [vmem:[#allocation5] sm:$0xff]
      %v722 = vld [vmem:[#allocation5 + $0x8] sm:$0xff]
      %v723 = vld [vmem:[#allocation5 + $0x10] sm:$0xff]
      %v724 = vld [vmem:[#allocation5 + $0x18] sm:$0xff]
      %v725 = vld [vmem:[#allocation5 + $0x20] sm:$0xff]
      %v726 = vld [vmem:[#allocation5 + $0x28] sm:$0xff]
      %v727 = vld [vmem:[#allocation5 + $0x30] sm:$0xff]
      %v728 = vld [vmem:[#allocation5 + $0x38] sm:$0xff]
      %v729 = vld [vmem:[#allocation5 + $0x40] sm:$0xff]
      %v730 = vld [vmem:[#allocation5 + $0x48] sm:$0xff]
      %v731 = vld [vmem:[#allocation5 + $0x50] sm:$0xff]
      %v732 = vld [vmem:[#allocation5 + $0x58] sm:$0xff]
      %v733 = vld [vmem:[#allocation5 + $0x60] sm:$0xff]
      %v734 = vld [vmem:[#allocation5 + $0x68] sm:$0xff]
      %v735 = vld [vmem:[#allocation5 + $0x70] sm:$0xff]
      %v736 = vld [vmem:[#allocation5 + $0x78] sm:$0xff]
      %v737 = vsel %vm705, %v721, 0.0
      %v738 = vsel %vm706, %v722, 0.0
      %v739 = vsel %vm707, %v723, 0.0
      %v740 = vsel %vm708, %v724, 0.0
      %v741 = vsel %vm709, %v725, 0.0
      %v742 = vsel %vm710, %v726, 0.0
      %v743 = vsel %vm711, %v727, 0.0
      %v744 = vsel %vm712, %v728, 0.0
      %v745 = vsel %vm713, %v729, 0.0
      %v746 = vsel %vm714, %v730, 0.0
      %v747 = vsel %vm715, %v731, 0.0
      %v748 = vsel %vm716, %v732, 0.0
      %v749 = vsel %vm717, %v733, 0.0
      %v750 = vsel %vm718, %v734, 0.0
      %v751 = vsel %vm719, %v735, 0.0
      %v752 = vsel %vm720, %v736, 0.0
      %v753 = vadd.f32 %v737, %v738
      %v754 = vadd.f32 %v753, %v739
      %v755 = vadd.f32 %v754, %v740
      %v756 = vadd.f32 %v755, %v741
      %v757 = vadd.f32 %v756, %v742
      %v758 = vadd.f32 %v757, %v743
      %v759 = vadd.f32 %v758, %v744
      %v760 = vadd.f32 %v759, %v745
      %v761 = vadd.f32 %v760, %v746
      %v762 = vadd.f32 %v761, %v747
      %v763 = vadd.f32 %v762, %v748
      %v764 = vadd.f32 %v763, %v749
      %v765 = vadd.f32 %v764, %v750
      %v766 = vadd.f32 %v765, %v751
      %v767 = vadd.f32 %v766, %v752
      %v768 = vrot.slane %v767, 4
      %v769 = vadd.f32 %v767, %v768
      %v770 = vrot.slane %v769, 2
      %v771 = vadd.f32 %v769, %v770
      %v772 = vrot.slane %v771, 1
      %v773 = vadd.f32 %v771, %v772
      %v774 = vld [vmem:[#allocation6] sm:$0xff]
      %v775 = vld [vmem:[#allocation6 + $0x8] sm:$0xff]
      %v776 = vld [vmem:[#allocation6 + $0x10] sm:$0xff]
      %v777 = vld [vmem:[#allocation6 + $0x18] sm:$0xff]
      %v778 = vld [vmem:[#allocation6 + $0x20] sm:$0xff]
      %v779 = vld [vmem:[#allocation6 + $0x28] sm:$0xff]
      %v780 = vld [vmem:[#allocation6 + $0x30] sm:$0xff]
      %v781 = vld [vmem:[#allocation6 + $0x38] sm:$0xff]
      %v782 = vld [vmem:[#allocation6 + $0x40] sm:$0xff]
      %v783 = vld [vmem:[#allocation6 + $0x48] sm:$0xff]
      %v784 = vld [vmem:[#allocation6 + $0x50] sm:$0xff]
      %v785 = vld [vmem:[#allocation6 + $0x58] sm:$0xff]
      %v786 = vld [vmem:[#allocation6 + $0x60] sm:$0xff]
      %v787 = vld [vmem:[#allocation6 + $0x68] sm:$0xff]
      %v788 = vld [vmem:[#allocation6 + $0x70] sm:$0xff]
      %v789 = vld [vmem:[#allocation6 + $0x78] sm:$0xff]
      %v790 = vsel %vm705, %v774, 0.0
      %v791 = vsel %vm706, %v775, 0.0
      %v792 = vsel %vm707, %v776, 0.0
      %v793 = vsel %vm708, %v777, 0.0
      %v794 = vsel %vm709, %v778, 0.0
      %v795 = vsel %vm710, %v779, 0.0
      %v796 = vsel %vm711, %v780, 0.0
      %v797 = vsel %vm712, %v781, 0.0
      %v798 = vsel %vm713, %v782, 0.0
      %v799 = vsel %vm714, %v783, 0.0
      %v800 = vsel %vm715, %v784, 0.0
      %v801 = vsel %vm716, %v785, 0.0
      %v802 = vsel %vm717, %v786, 0.0
      %v803 = vsel %vm718, %v787, 0.0
      %v804 = vsel %vm719, %v788, 0.0
      %v805 = vsel %vm720, %v789, 0.0
      %v806 = vadd.f32 %v790, %v791
      %v807 = vadd.f32 %v806, %v792
      %v808 = vadd.f32 %v807, %v793
      %v809 = vadd.f32 %v808, %v794
      %v810 = vadd.f32 %v809, %v795
      %v811 = vadd.f32 %v810, %v796
      %v812 = vadd.f32 %v811, %v797
      %v813 = vadd.f32 %v812, %v798
      %v814 = vadd.f32 %v813, %v799
      %v815 = vadd.f32 %v814, %v800
      %v816 = vadd.f32 %v815, %v801
      %v817 = vadd.f32 %v816, %v802
      %v818 = vadd.f32 %v817, %v803
      %v819 = vadd.f32 %v818, %v804
      %v820 = vadd.f32 %v819, %v805
      %v821 = vrot.slane %v820, 4
      %v822 = vadd.f32 %v820, %v821
      %v823 = vrot.slane %v822, 2
      %v824 = vadd.f32 %v822, %v823
      %v825 = vrot.slane %v824, 1
      %v826 = vadd.f32 %v824, %v825
      %v827 = vmul.f32 %v683, 32.0
      %v828 = vmul.f32 %v827, %v683
      %v829 = vsub.f32 %v773, %v828
      %v830 = vmul.f32 %v685, 32.0
      %v831 = vmul.f32 %v830, %v685
      %v832 = vsub.f32 %v826, %v831
      %v833 = vmul.f32 %v829, 0.032258064
      %v834 = vadd.f32 %v833, 0.0001
      %v835 = vrsqrt.pop %v834
      %v836 = vmul.f32 %v834, %v835
      %vm837 = vcmp.eq.f32.partialorder %v834, inf
      %v838 = vsel %vm837, %v834, %v836
      %vm839 = vcmp.eq.f32.partialorder %v834, 0.0
      %v840 = vand.u32 %v834, 2147483648
      %v841 = vsel %vm839, %v840, %v838
      %v842 = vmul.f32 %v832, 0.032258064
      %v843 = vadd.f32 %v842, 0.0001
      %v844 = vrsqrt.pop %v843
      %v845 = vmul.f32 %v843, %v844
      %vm846 = vcmp.eq.f32.partialorder %v843, inf
      %v847 = vsel %vm846, %v843, %v845
      %vm848 = vcmp.eq.f32.partialorder %v843, 0.0
      %v849 = vand.u32 %v843, 2147483648
      %v850 = vsel %vm848, %v849, %v847
      %v851 = vsub.f32 1.0, %v841
      %v852 = vmax.f32 %v851, 0.0
      %vm853 = vcmask 1040384
      %v854 = vsel %vm853, %v852, 0.0
      %855 = vadd.xlane.f32.xlu0 %v854
      %v856 = vpop.xlane.xlu0 %855
      %v857 = vrot.slane %v856, 4
      %v858 = vadd.f32 %v856, %v857
      %v859 = vrot.slane %v858, 2
      %v860 = vadd.f32 %v858, %v859
      %v861 = vrot.slane %v860, 1
      %v862 = vadd.f32 %v860, %v861
      %s863 = vtos %v862
      %v864 = vsub.f32 1.0, %v850
      %v865 = vmax.f32 %v864, 0.0
      %v866 = vsel %vm853, %v865, 0.0
      %867 = vadd.xlane.f32.xlu0 %v866
      %v868 = vpop.xlane.xlu0 %867
      %v869 = vrot.slane %v868, 4
      %v870 = vadd.f32 %v868, %v869
      %v871 = vrot.slane %v870, 2
      %v872 = vadd.f32 %v870, %v871
      %v873 = vrot.slane %v872, 1
      %v874 = vadd.f32 %v872, %v873
      %s875 = vtos %v874
      %s876 = sadd.f32 %s863, %s875
      %v877 = vrcp.pop 128.0
      %s878 = vtos %v877
      %s879 = smul.f32 %s876, %s878
      %v880 = vld [vmem:[#allocation4] sm:$0x1]
      %v881 = vsel %vm853, %v880, 0.0
      %882 = vadd.xlane.f32.xlu0 %v881
      %v883 = vpop.xlane.xlu0 %882
      %v884 = vrot.slane %v883, 4
      %v885 = vadd.f32 %v883, %v884
      %v886 = vrot.slane %v885, 2
      %v887 = vadd.f32 %v885, %v886
      %v888 = vrot.slane %v887, 1
      %v889 = vadd.f32 %v887, %v888
      %s890 = vtos %v889
      %v891 = vrcp.pop 4096.0
      %s892 = vtos %v891
      %s893 = smul.f32 %s890, %s892
      %v894 = vmul.f32 %v721, %v721
      %v895 = vmul.f32 %v722, %v722
      %v896 = vmul.f32 %v723, %v723
      %v897 = vmul.f32 %v724, %v724
      %v898 = vmul.f32 %v725, %v725
      %v899 = vmul.f32 %v726, %v726
      %v900 = vmul.f32 %v727, %v727
      %v901 = vmul.f32 %v728, %v728
      %v902 = vmul.f32 %v729, %v729
      %v903 = vmul.f32 %v730, %v730
      %v904 = vmul.f32 %v731, %v731
      %v905 = vmul.f32 %v732, %v732
      %v906 = vmul.f32 %v733, %v733
      %v907 = vmul.f32 %v734, %v734
      %v908 = vmul.f32 %v735, %v735
      %v909 = vmul.f32 %v736, %v736
      %v910 = vadd.f32 %v894, %v895
      %v911 = vadd.f32 %v910, %v896
      %v912 = vadd.f32 %v911, %v897
      %v913 = vadd.f32 %v912, %v898
      %v914 = vadd.f32 %v913, %v899
      %v915 = vadd.f32 %v914, %v900
      %v916 = vadd.f32 %v915, %v901
      %v917 = vadd.f32 %v916, %v902
      %v918 = vadd.f32 %v917, %v903
      %v919 = vadd.f32 %v918, %v904
      %v920 = vadd.f32 %v919, %v905
      %v921 = vadd.f32 %v920, %v906
      %v922 = vadd.f32 %v921, %v907
      %v923 = vadd.f32 %v922, %v908
      %v924 = vadd.f32 %v923, %v909
      %925 = vadd.xlane.f32.xlu0 %v924
      %v926 = vpop.xlane.xlu0 %925
      %v927 = vrot.slane %v926, 4
      %v928 = vadd.f32 %v926, %v927
      %v929 = vrot.slane %v928, 2
      %v930 = vadd.f32 %v928, %v929
      %v931 = vrot.slane %v930, 1
      %v932 = vadd.f32 %v930, %v931
      %s933 = vtos %v932
      %934 = vmatprep.subr.mxu0 0.0
      %935 = vmatpush1.msra.mxu0 %v721
      %936 = vmatprep.subr.mxu0 0.0
      %937 = vmatpush1.msra.mxu0 %v722
      %938 = vmatprep.subr.mxu0 0.0
      %939 = vmatpush1.msra.mxu0 %v723
      %940 = vmatprep.subr.mxu0 0.0
      %941 = vmatpush1.msra.mxu0 %v724
      %942 = vmatprep.subr.mxu0 0.0
      %943 = vmatpush1.msra.mxu0 %v725
      %944 = vmatprep.subr.mxu0 0.0
      %945 = vmatpush1.msra.mxu0 %v726
      %946 = vmatprep.subr.mxu0 0.0
      %947 = vmatpush1.msra.mxu0 %v727
      %948 = vmatprep.subr.mxu0 0.0
      %949 = vmatpush1.msra.mxu0 %v728
      %950 = vmatprep.subr.mxu0 0.0
      %951 = vmatpush1.msra.mxu0 %v729
      %952 = vmatprep.subr.mxu0 0.0
      %953 = vmatpush1.msra.mxu0 %v730
      %954 = vmatprep.subr.mxu0 0.0
      %955 = vmatpush1.msra.mxu0 %v731
      %956 = vmatprep.subr.mxu0 0.0
      %957 = vmatpush1.msra.mxu0 %v732
      %958 = vmatprep.subr.mxu0 0.0
      %959 = vmatpush1.msra.mxu0 %v733
      %960 = vmatprep.subr.mxu0 0.0
      %961 = vmatpush1.msra.mxu0 %v734
      %962 = vmatprep.subr.mxu0 0.0
      %963 = vmatpush1.msra.mxu0 %v735
      %964 = vmatprep.subr.mxu0 0.0
      %965 = vmatpush1.msra.mxu0 %v736
      %966 = vmatprep.subr.mxu0 0.0
      %967 = vmatpush1.msra.mxu0 0.0
      %968 = vmatprep.subr.mxu0 0.0
      %969 = vmatpush1.msra.mxu0 0.0
      %970 = vmatprep.subr.mxu0 0.0
      %971 = vmatpush1.msra.mxu0 0.0
      %972 = vmatprep.subr.mxu0 0.0
      %973 = vmatpush1.msra.mxu0 0.0
      %974 = vmatprep.subr.mxu0 0.0
      %975 = vmatpush1.msra.mxu0 0.0
      %976 = vmatprep.subr.mxu0 0.0
      %977 = vmatpush1.msra.mxu0 0.0
      %978 = vmatprep.subr.mxu0 0.0
      %979 = vmatpush1.msra.mxu0 0.0
      %980 = vmatprep.subr.mxu0 0.0
      %981 = vmatpush1.msra.mxu0 0.0
      %982 = vmatprep.subr.mxu0 0.0
      %983 = vmatpush1.msra.mxu0 0.0
      %984 = vmatprep.subr.mxu0 0.0
      %985 = vmatpush1.msra.mxu0 0.0
      %986 = vmatprep.subr.mxu0 0.0
      %987 = vmatpush1.msra.mxu0 0.0
      %988 = vmatprep.subr.mxu0 0.0
      %989 = vmatpush1.msra.mxu0 0.0
      %990 = vmatprep.subr.mxu0 0.0
      %991 = vmatpush1.msra.mxu0 0.0
      %992 = vmatprep.subr.mxu0 0.0
      %993 = vmatpush1.msra.mxu0 0.0
      %994 = vmatprep.subr.mxu0 0.0
      %995 = vmatpush1.msra.mxu0 0.0
      %996 = vmatprep.subr.mxu0 0.0
      %997 = vmatpush1.msra.mxu0 0.0
      %998 = vmatprep.mubr.f32.mxu0 0.0
      %999 = vmatmul.mubr.f32.gmra.mrb[0].mxu0 %v683
      %v1000 = vpop.f32.mrb[0].mxu0
      %v1001 = vadd.f32 0.0, %v1000
      %v1002 = vpop.f32.mrb[0].mxu0
      %1003 = vdwg.mxu0
      %v1004 = vmul.f32 %v1001, %v683
      %v1005 = vsel %vm853, %v1004, 0.0
      %1006 = vadd.xlane.f32.xlu0 %v1005
      %v1007 = vpop.xlane.xlu0 %1006
      %v1008 = vrot.slane %v1007, 4
      %v1009 = vadd.f32 %v1007, %v1008
      %v1010 = vrot.slane %v1009, 2
      %v1011 = vadd.f32 %v1009, %v1010
      %v1012 = vrot.slane %v1011, 1
      %v1013 = vadd.f32 %v1011, %v1012
      %s1014 = vtos %v1013
      %v1015 = vmul.f32 %v683, %v683
      %v1016 = vsel %vm853, %v1015, 0.0
      %1017 = vadd.xlane.f32.xlu0 %v1016
      %v1018 = vpop.xlane.xlu0 %1017
      %v1019 = vrot.slane %v1018, 4
      %v1020 = vadd.f32 %v1018, %v1019
      %v1021 = vrot.slane %v1020, 2
      %v1022 = vadd.f32 %v1020, %v1021
      %v1023 = vrot.slane %v1022, 1
      %v1024 = vadd.f32 %v1022, %v1023
      %s1025 = vtos %v1024
      %s1026 = smul.f32 %s1025, 32.0
      %s1027 = smul.f32 %s1014, 64.0
      %s1028 = ssub.f32 %s933, %s1027
      %s1029 = smul.f32 %s1026, %s1026
      %s1030 = sadd.f32 %s1028, %s1029
      %v1031 = vmul.f32 %v829, %v829
      %v1032 = vsel %vm853, %v1031, 0.0
      %1033 = vadd.xlane.f32.xlu0 %v1032
      %v1034 = vpop.xlane.xlu0 %1033
      %v1035 = vrot.slane %v1034, 4
      %v1036 = vadd.f32 %v1034, %v1035
      %v1037 = vrot.slane %v1036, 2
      %v1038 = vadd.f32 %v1036, %v1037
      %v1039 = vrot.slane %v1038, 1
      %v1040 = vadd.f32 %v1038, %v1039
      %s1041 = vtos %v1040
      %s1042 = ssub.f32 %s1030, %s1041
      %v1043 = vmul.f32 %v774, %v774
      %v1044 = vmul.f32 %v775, %v775
      %v1045 = vmul.f32 %v776, %v776
      %v1046 = vmul.f32 %v777, %v777
      %v1047 = vmul.f32 %v778, %v778
      %v1048 = vmul.f32 %v779, %v779
      %v1049 = vmul.f32 %v780, %v780
      %v1050 = vmul.f32 %v781, %v781
      %v1051 = vmul.f32 %v782, %v782
      %v1052 = vmul.f32 %v783, %v783
      %v1053 = vmul.f32 %v784, %v784
      %v1054 = vmul.f32 %v785, %v785
      %v1055 = vmul.f32 %v786, %v786
      %v1056 = vmul.f32 %v787, %v787
      %v1057 = vmul.f32 %v788, %v788
      %v1058 = vmul.f32 %v789, %v789
      %v1059 = vadd.f32 %v1043, %v1044
      %v1060 = vadd.f32 %v1059, %v1045
      %v1061 = vadd.f32 %v1060, %v1046
      %v1062 = vadd.f32 %v1061, %v1047
      %v1063 = vadd.f32 %v1062, %v1048
      %v1064 = vadd.f32 %v1063, %v1049
      %v1065 = vadd.f32 %v1064, %v1050
      %v1066 = vadd.f32 %v1065, %v1051
      %v1067 = vadd.f32 %v1066, %v1052
      %v1068 = vadd.f32 %v1067, %v1053
      %v1069 = vadd.f32 %v1068, %v1054
      %v1070 = vadd.f32 %v1069, %v1055
      %v1071 = vadd.f32 %v1070, %v1056
      %v1072 = vadd.f32 %v1071, %v1057
      %v1073 = vadd.f32 %v1072, %v1058
      %1074 = vadd.xlane.f32.xlu0 %v1073
      %v1075 = vpop.xlane.xlu0 %1074
      %v1076 = vrot.slane %v1075, 4
      %v1077 = vadd.f32 %v1075, %v1076
      %v1078 = vrot.slane %v1077, 2
      %v1079 = vadd.f32 %v1077, %v1078
      %v1080 = vrot.slane %v1079, 1
      %v1081 = vadd.f32 %v1079, %v1080
      %s1082 = vtos %v1081
      %1083 = vmatprep.subr.mxu0 0.0
      %1084 = vmatpush1.msra.mxu0 %v774
      %1085 = vmatprep.subr.mxu0 0.0
      %1086 = vmatpush1.msra.mxu0 %v775
      %1087 = vmatprep.subr.mxu0 0.0
      %1088 = vmatpush1.msra.mxu0 %v776
      %1089 = vmatprep.subr.mxu0 0.0
      %1090 = vmatpush1.msra.mxu0 %v777
      %1091 = vmatprep.subr.mxu0 0.0
      %1092 = vmatpush1.msra.mxu0 %v778
      %1093 = vmatprep.subr.mxu0 0.0
      %1094 = vmatpush1.msra.mxu0 %v779
      %1095 = vmatprep.subr.mxu0 0.0
      %1096 = vmatpush1.msra.mxu0 %v780
      %1097 = vmatprep.subr.mxu0 0.0
      %1098 = vmatpush1.msra.mxu0 %v781
      %1099 = vmatprep.subr.mxu0 0.0
      %1100 = vmatpush1.msra.mxu0 %v782
      %1101 = vmatprep.subr.mxu0 0.0
      %1102 = vmatpush1.msra.mxu0 %v783
      %1103 = vmatprep.subr.mxu0 0.0
      %1104 = vmatpush1.msra.mxu0 %v784
      %1105 = vmatprep.subr.mxu0 0.0
      %1106 = vmatpush1.msra.mxu0 %v785
      %1107 = vmatprep.subr.mxu0 0.0
      %1108 = vmatpush1.msra.mxu0 %v786
      %1109 = vmatprep.subr.mxu0 0.0
      %1110 = vmatpush1.msra.mxu0 %v787
      %1111 = vmatprep.subr.mxu0 0.0
      %1112 = vmatpush1.msra.mxu0 %v788
      %1113 = vmatprep.subr.mxu0 0.0
      %1114 = vmatpush1.msra.mxu0 %v789
      %1115 = vmatprep.subr.mxu0 0.0
      %1116 = vmatpush1.msra.mxu0 0.0
      %1117 = vmatprep.subr.mxu0 0.0
      %1118 = vmatpush1.msra.mxu0 0.0
      %1119 = vmatprep.subr.mxu0 0.0
      %1120 = vmatpush1.msra.mxu0 0.0
      %1121 = vmatprep.subr.mxu0 0.0
      %1122 = vmatpush1.msra.mxu0 0.0
      %1123 = vmatprep.subr.mxu0 0.0
      %1124 = vmatpush1.msra.mxu0 0.0
      %1125 = vmatprep.subr.mxu0 0.0
      %1126 = vmatpush1.msra.mxu0 0.0
      %1127 = vmatprep.subr.mxu0 0.0
      %1128 = vmatpush1.msra.mxu0 0.0
      %1129 = vmatprep.subr.mxu0 0.0
      %1130 = vmatpush1.msra.mxu0 0.0
      %1131 = vmatprep.subr.mxu0 0.0
      %1132 = vmatpush1.msra.mxu0 0.0
      %1133 = vmatprep.subr.mxu0 0.0
      %1134 = vmatpush1.msra.mxu0 0.0
      %1135 = vmatprep.subr.mxu0 0.0
      %1136 = vmatpush1.msra.mxu0 0.0
      %1137 = vmatprep.subr.mxu0 0.0
      %1138 = vmatpush1.msra.mxu0 0.0
      %1139 = vmatprep.subr.mxu0 0.0
      %1140 = vmatpush1.msra.mxu0 0.0
      %1141 = vmatprep.subr.mxu0 0.0
      %1142 = vmatpush1.msra.mxu0 0.0
      %1143 = vmatprep.subr.mxu0 0.0
      %1144 = vmatpush1.msra.mxu0 0.0
      %1145 = vmatprep.subr.mxu0 0.0
      %1146 = vmatpush1.msra.mxu0 0.0
      %1147 = vmatprep.mubr.f32.mxu0 0.0
      %1148 = vmatmul.mubr.f32.gmra.mrb[0].mxu0 %v685
      %v1149 = vpop.f32.mrb[0].mxu0
      %v1150 = vadd.f32 0.0, %v1149
      %v1151 = vpop.f32.mrb[0].mxu0
      %1152 = vdwg.mxu0
      %v1153 = vmul.f32 %v1150, %v685
      %v1154 = vsel %vm853, %v1153, 0.0
      %1155 = vadd.xlane.f32.xlu0 %v1154
      %v1156 = vpop.xlane.xlu0 %1155
      %v1157 = vrot.slane %v1156, 4
      %v1158 = vadd.f32 %v1156, %v1157
      %v1159 = vrot.slane %v1158, 2
      %v1160 = vadd.f32 %v1158, %v1159
      %v1161 = vrot.slane %v1160, 1
      %v1162 = vadd.f32 %v1160, %v1161
      %s1163 = vtos %v1162
      %v1164 = vmul.f32 %v685, %v685
      %v1165 = vsel %vm853, %v1164, 0.0
      %1166 = vadd.xlane.f32.xlu0 %v1165
      %v1167 = vpop.xlane.xlu0 %1166
      %v1168 = vrot.slane %v1167, 4
      %v1169 = vadd.f32 %v1167, %v1168
      %v1170 = vrot.slane %v1169, 2
      %v1171 = vadd.f32 %v1169, %v1170
      %v1172 = vrot.slane %v1171, 1
      %v1173 = vadd.f32 %v1171, %v1172
      %s1174 = vtos %v1173
      %s1175 = smul.f32 %s1174, 32.0
      %s1176 = smul.f32 %s1163, 64.0
      %s1177 = ssub.f32 %s1082, %s1176
      %s1178 = smul.f32 %s1175, %s1175
      %s1179 = sadd.f32 %s1177, %s1178
      %v1180 = vmul.f32 %v832, %v832
      %v1181 = vsel %vm853, %v1180, 0.0
      %1182 = vadd.xlane.f32.xlu0 %v1181
      %v1183 = vpop.xlane.xlu0 %1182
      %v1184 = vrot.slane %v1183, 4
      %v1185 = vadd.f32 %v1183, %v1184
      %v1186 = vrot.slane %v1185, 2
      %v1187 = vadd.f32 %v1185, %v1186
      %v1188 = vrot.slane %v1187, 1
      %v1189 = vadd.f32 %v1187, %v1188
      %s1190 = vtos %v1189
      %s1191 = ssub.f32 %s1179, %s1190
      %s1192 = sadd.f32 %s1042, %s1191
      %s1193 = smul.f32 %s1192, 0.0010405827
      %v1194 = vrcp.pop 16384.0
      %s1195 = vtos %v1194
      %s1196 = smul.f32 %s1193, %s1195
      %s1197 = sadd.f32 %s893, %s879
      %s1198 = sadd.f32 %s1197, %s1196
      %s1199 = scalar_lea.smem [#allocation12], 0
      %1200 = sst [smem:[%s1199]] %s1198
    $region25: #{tpu_custom_call.1} parent=1 // pred_fallthru
      _
    // Predicated region
    $region26: #{tpu_custom_call.1} parent=1 // pred_check
      _
    $region27: #{tpu_custom_call.1} parent=1 // pred_check_branch
      %1202 = sbr.rel (0) target = $region29
    $region28: #{tpu_custom_call.1} parent=1 // pred_region
      %s1204 = ssub.s32 16, 16
      %1205 = vsyncadd [#allocation9], %s1204
      %1208 = dma.smem_to_hbm [#allocation12], 16, %s2, [#allocation9]
    $region29: #{tpu_custom_call.1} parent=1 // pred_fallthru
      _
    // Predicated region
    $region30: #{tpu_custom_call.1} parent=1 // pred_check
      _
    $region31: #{tpu_custom_call.1} parent=1 // pred_check_branch
      %1210 = sbr.rel (0) target = $region33
    $region32: #{tpu_custom_call.1} parent=1 // pred_region
      %1211 = dma.done [#allocation9], 16
    $region33: #{tpu_custom_call.1} parent=1 // pred_fallthru
      _
    %1212 = sfence
    %1213 = vsyncpa [#allocation8], 1
    %1214 = vsyncpa [#allocation11], 1
    %1215 = vsyncpa [#allocation9], 1

</llo_original>
